<compile_context>
chip_gen: v5e
topology: v5e:2x2
jax: 0.10.0
libtpu: 0.0.40
codegen_flags: <defaults>
</compile_context>

<pallas_src>
import math

import jax
import jax.numpy as jnp
from jax import lax
from jax.experimental import pallas as pl
from jax.experimental.pallas import tpu as pltpu

# ---------------- model config (small, BERT-like) ----------------
B = 2          # batch
S = 8          # sequence length
H = 32         # hidden size
NH = 4         # num attention heads
DH = H // NH   # head dim
I = 64         # intermediate (FFN) size
NUM_LAYERS = 2
LN_EPS = 1e-12  # BERT default


def _layernorm(x, gamma, beta):
    mu = jnp.mean(x, axis=-1, keepdims=True)
    var = jnp.mean((x - mu) * (x - mu), axis=-1, keepdims=True)
    return (x - mu) * lax.rsqrt(var + LN_EPS) * gamma + beta


def _gelu(x):
    # exact (erf) GELU, matching HF BERT's default "gelu"
    return 0.5 * x * (1.0 + lax.erf(x / jnp.sqrt(2.0).astype(x.dtype)))


# ---------------- fused Pallas kernel ----------------
def fused_encoder_kernel(x_ref, mask_ref,
                         wqkv_ref, bqkv_ref, wo_ref,
                         w1_ref, b1_ref, w2_ref, vecs_ref,
                         wqa_ref, bqa_ref, o_ref):
    # x_ref:    (1, S, H)   one batch row
    # mask_ref: (1, 1, S)   additive attention mask (0 / -10000)
    # wqkv_ref: (L*3, NH, H, DH)   q/k/v projection weights, head-batched
    # bqkv_ref: (L*3, NH, 1, DH)
    # wo_ref:   (L, NH, DH, H)     output projection, head-batched
    # w1_ref:   (L, H, I)   b1_ref: (L, 1, I)   w2_ref: (L, I, H)
    # vecs_ref: (L, 6, H)   rows: bo, ln1_g, ln1_b, b_ffn2, ln2_g, ln2_b
    # wqa_ref:  (H, 2)      bqa_ref: (1, 2)
    x = x_ref[0].astype(jnp.float32)                                   # [S, H]
    # hoist the mask broadcast once (shared by every layer / head)
    mask_b = jnp.broadcast_to(mask_ref[0].astype(jnp.float32)[None], (NH, S, S))
    scale = jnp.float32(1.0 / math.sqrt(DH))

    for l in range(NUM_LAYERS):            # static unroll (NUM_LAYERS == 2)
        wo = wo_ref[l]                     # [NH, DH, H]
        vecs = vecs_ref[l]                 # [6, H]
        bo, g1, be1, b2, g2, be2 = (vecs[0:1], vecs[1:2], vecs[2:3],
                                    vecs[3:4], vecs[4:5], vecs[5:6])

        # ---- head-batched self-attention (batched dot_generals only) ----
        xb = jnp.broadcast_to(x[None], (NH, S, H))                     # [NH, S, H]
        q = jnp.einsum('nsh,nhd->nsd', xb, wqkv_ref[3 * l + 0],
                       preferred_element_type=jnp.float32) + bqkv_ref[3 * l + 0]
        k = jnp.einsum('nsh,nhd->nsd', xb, wqkv_ref[3 * l + 1],
                       preferred_element_type=jnp.float32) + bqkv_ref[3 * l + 1]
        v = jnp.einsum('nsh,nhd->nsd', xb, wqkv_ref[3 * l + 2],
                       preferred_element_type=jnp.float32) + bqkv_ref[3 * l + 2]

        scores = jnp.einsum('nqd,nkd->nqk', q, k,
                            preferred_element_type=jnp.float32) * scale + mask_b
        scores = scores - jnp.max(scores, axis=-1, keepdims=True)      # HF-parity softmax
        p = jnp.exp(scores)
        p = p * pl.reciprocal(jnp.sum(p, axis=-1, keepdims=True), approx=True)
        ctx = jnp.einsum('nqk,nkd->nqd', p, v,
                         preferred_element_type=jnp.float32)           # [NH, S, DH]

        attn = jnp.einsum('nqd,ndo->nqo', ctx, wo,
                          preferred_element_type=jnp.float32)          # [NH, S, H]
        attn_out = jnp.sum(attn, axis=0) + bo                          # [S, H]
        h1 = _layernorm(x + attn_out, g1, be1)

        # ---- FFN ----
        inter = _gelu(jnp.dot(h1, w1_ref[l],
                              preferred_element_type=jnp.float32) + b1_ref[l])
        ffn = jnp.dot(inter, w2_ref[l],
                      preferred_element_type=jnp.float32) + b2
        x = _layernorm(h1 + ffn, g2, be2)

    # ---- qa_outputs head (fused; written only here, no extra launch) ----
    o_ref[0] = (jnp.dot(x, wqa_ref[...], preferred_element_type=jnp.float32)
                + bqa_ref[...]).astype(o_ref.dtype)


# ---------------- host-side weight packing (one-time) ----------------
def pack_params(layer_params, qa_params):
    def head_w(w):   # [H, H_out] -> [NH, H, DH]  (output features are head-major)
        return w.reshape(H, NH, DH).transpose(1, 0, 2)

    def head_b(b):   # [1, H] -> [NH, 1, DH]
        return b.reshape(NH, DH)[:, None, :]

    wqkv, bqkv, wo_r, w1s, b1s, w2s, vecs = [], [], [], [], [], [], []
    for (wq, bq, wk, bk, wv, bv, wo, bo, g1, be1,
         w1, bi1, w2, bi2, g2, be2) in layer_params:
        wqkv += [head_w(wq), head_w(wk), head_w(wv)]
        bqkv += [head_b(bq), head_b(bk), head_b(bv)]
        wo_r.append(wo.reshape(NH, DH, H))
        w1s.append(w1)
        b1s.append(bi1.reshape(1, I))
        w2s.append(w2)
        vecs.append(jnp.stack([bo.reshape(H), g1.reshape(H), be1.reshape(H),
                               bi2.reshape(H), g2.reshape(H), be2.reshape(H)], axis=0))

    w_qa, b_qa = qa_params
    return (jnp.stack(wqkv),    # (L*3, NH, H, DH)
            jnp.stack(bqkv),    # (L*3, NH, 1, DH)
            jnp.stack(wo_r),    # (L, NH, DH, H)
            jnp.stack(w1s),     # (L, H, I)
            jnp.stack(b1s),     # (L, 1, I)
            jnp.stack(w2s),     # (L, I, H)
            jnp.stack(vecs),    # (L, 6, H)
            w_qa,               # (H, 2)
            b_qa.reshape(1, 2)) # (1, 2)


# ---------------- wrapper calling pallas_call ----------------
def _full_spec(shape):
    # whole-array block, constant block index across the batch grid (DMA'd once)
    nd = len(shape)
    return pl.BlockSpec(shape, lambda b, _nd=nd: (0,) * _nd)


def encoder_wrapper_forward(emb_output, extended_attention_mask, packed_params):
    # extended_attention_mask: [B, 1, 1, S] additive mask (HF convention)
    mask3 = extended_attention_mask.reshape(B, 1, S).astype(jnp.float32)
    x = emb_output.astype(jnp.float32)

    in_specs = ([pl.BlockSpec((1, S, H), lambda b: (b, 0, 0)),   # x
                 pl.BlockSpec((1, 1, S), lambda b: (b, 0, 0))]   # additive mask
                + [_full_spec(p.shape) for p in packed_params])

    return pl.pallas_call(
        fused_encoder_kernel,
        out_shape=jax.ShapeDtypeStruct((B, S, 2), jnp.float32),
        grid=(B,),
        in_specs=in_specs,
        out_specs=pl.BlockSpec((1, S, 2), lambda b: (b, 0, 0)),
        compiler_params=pltpu.CompilerParams(dimension_semantics=("parallel",)),
    )(x, mask3, *packed_params)


# ---------------- deterministic parameter init ----------------
def init_params(key):
    def nrm(k, shape):
        return jax.random.normal(k, shape, dtype=jnp.float32) * 0.02

    layer_params = []
    for l in range(NUM_LAYERS):
        ks = jax.random.split(jax.random.fold_in(key, l), 8)
        params = (
            nrm(ks[0], (H, H)), jnp.zeros((1, H), jnp.float32),   # wq, bq
            nrm(ks[1], (H, H)), jnp.zeros((1, H), jnp.float32),   # wk, bk
            nrm(ks[2], (H, H)), jnp.zeros((1, H), jnp.float32),   # wv, bv
            nrm(ks[3], (H, H)), jnp.zeros((1, H), jnp.float32),   # wo, bo
            jnp.ones((1, H), jnp.float32), jnp.zeros((1, H), jnp.float32),  # ln1
            nrm(ks[4], (H, I)), jnp.zeros((1, I), jnp.float32),   # w1, b1
            nrm(ks[5], (I, H)), jnp.zeros((1, H), jnp.float32),   # w2, b2
            jnp.ones((1, H), jnp.float32), jnp.zeros((1, H), jnp.float32),  # ln2
        )
        layer_params.append(params)
    kq = jax.random.fold_in(key, 1000)
    qa_params = (nrm(kq, (H, 2)), jnp.zeros((1, 2), jnp.float32))
    return layer_params, qa_params


if __name__ == "__main__":
    key = jax.random.PRNGKey(0)
    k_emb, k_mask, k_par = jax.random.split(key, 3)

    emb_output = jax.random.normal(k_emb, (B, S, H), dtype=jnp.float32)
    # binary attention mask -> HF extended additive mask [B,1,1,S]: 0 keep, -10000 pad
    attn_mask = (jax.random.uniform(k_mask, (B, S)) > 0.2).astype(jnp.float32)
    extended_attention_mask = (1.0 - attn_mask)[:, None, None, :] * -10000.0

    layer_params, qa_params = init_params(k_par)
    packed_params = pack_params(layer_params, qa_params)   # one-time weight repack

    out = encoder_wrapper_forward(emb_output, extended_attention_mask, packed_params)
    out = jax.block_until_ready(out)
    assert out.shape == (B, S, 2) and bool(jnp.all(jnp.isfinite(out)))
    print("KERNEL_OK")
</pallas_src>

<mosaic_0001>
module attributes {stable_mosaic.version = 11 : i64} {
  func.func @fused_encoder_kernel(%arg0: i32, %arg1: memref<1x8x32xf32, #tpu.memory_space<vmem>>, %arg2: memref<1x1x8xf32, #tpu.memory_space<vmem>>, %arg3: memref<6x4x32x8xf32, #tpu.memory_space<vmem>>, %arg4: memref<6x4x1x8xf32, #tpu.memory_space<vmem>>, %arg5: memref<2x4x8x32xf32, #tpu.memory_space<vmem>>, %arg6: memref<2x32x64xf32, #tpu.memory_space<vmem>>, %arg7: memref<2x1x64xf32, #tpu.memory_space<vmem>>, %arg8: memref<2x64x32xf32, #tpu.memory_space<vmem>>, %arg9: memref<2x6x32xf32, #tpu.memory_space<vmem>>, %arg10: memref<32x2xf32, #tpu.memory_space<vmem>>, %arg11: memref<1x2xf32, #tpu.memory_space<vmem>>, %arg12: memref<1x8x2xf32, #tpu.memory_space<vmem>>) attributes {dimension_semantics = [#tpu.dimension_semantics<parallel>], iteration_bounds = array<i64: 2>, scalar_prefetch = 0 : i64, scratch_operands = 0 : i64, tpu.core_type = #tpu.core_type<tc>, window_params = [{transform_indices = @transform_0, window_bounds = array<i64: 1, 8, 32>}, {transform_indices = @transform_1, window_bounds = array<i64: 1, 1, 8>}, {pipeline_mode = #tpu.pipeline_mode<synchronous>, transform_indices = @transform_2, window_bounds = array<i64: 6, 4, 32, 8>}, {pipeline_mode = #tpu.pipeline_mode<synchronous>, transform_indices = @transform_3, window_bounds = array<i64: 6, 4, 1, 8>}, {pipeline_mode = #tpu.pipeline_mode<synchronous>, transform_indices = @transform_4, window_bounds = array<i64: 2, 4, 8, 32>}, {pipeline_mode = #tpu.pipeline_mode<synchronous>, transform_indices = @transform_5, window_bounds = array<i64: 2, 32, 64>}, {pipeline_mode = #tpu.pipeline_mode<synchronous>, transform_indices = @transform_6, window_bounds = array<i64: 2, 1, 64>}, {pipeline_mode = #tpu.pipeline_mode<synchronous>, transform_indices = @transform_7, window_bounds = array<i64: 2, 64, 32>}, {pipeline_mode = #tpu.pipeline_mode<synchronous>, transform_indices = @transform_8, window_bounds = array<i64: 2, 6, 32>}, {pipeline_mode = #tpu.pipeline_mode<synchronous>, transform_indices = @transform_9, window_bounds = array<i64: 32, 2>}, {pipeline_mode = #tpu.pipeline_mode<synchronous>, transform_indices = @transform_10, window_bounds = array<i64: 1, 2>}, {transform_indices = @transform_11, window_bounds = array<i64: 1, 8, 2>}]} {
    %c0 = arith.constant 0 : index
    %c0_0 = arith.constant 0 : index
    %c0_1 = arith.constant 0 : index
    %0 = vector.load %arg1[%c0, %c0_0, %c0_1] : memref<1x8x32xf32, #tpu.memory_space<vmem>>, vector<1x8x32xf32>
    %1 = vector.shape_cast %0 : vector<1x8x32xf32> to vector<8x32xf32>
    %c0_2 = arith.constant 0 : index
    %c0_3 = arith.constant 0 : index
    %c0_4 = arith.constant 0 : index
    %2 = vector.load %arg2[%c0_2, %c0_3, %c0_4] : memref<1x1x8xf32, #tpu.memory_space<vmem>>, vector<1x1x8xf32>
    %3 = vector.shape_cast %2 : vector<1x1x8xf32> to vector<1x8xf32>
    %4 = vector.shape_cast %3 : vector<1x8xf32> to vector<1x1x8xf32>
    %5 = vector.shape_cast %4 : vector<1x1x8xf32> to vector<1x1x8xf32>
    %6 = vector.broadcast %5 : vector<1x1x8xf32> to vector<4x8x8xf32>
    %c0_5 = arith.constant 0 : index
    %c0_6 = arith.constant 0 : index
    %c0_7 = arith.constant 0 : index
    %c0_8 = arith.constant 0 : index
    %7 = vector.load %arg5[%c0_5, %c0_6, %c0_7, %c0_8] : memref<2x4x8x32xf32, #tpu.memory_space<vmem>>, vector<1x4x8x32xf32>
    %8 = vector.shape_cast %7 : vector<1x4x8x32xf32> to vector<4x8x32xf32>
    %c0_9 = arith.constant 0 : index
    %c0_10 = arith.constant 0 : index
    %c0_11 = arith.constant 0 : index
    %9 = vector.load %arg9[%c0_9, %c0_10, %c0_11] : memref<2x6x32xf32, #tpu.memory_space<vmem>>, vector<1x6x32xf32>
    %10 = vector.shape_cast %9 : vector<1x6x32xf32> to vector<6x32xf32>
    %11 = vector.extract_strided_slice %10 {offsets = [0, 0], sizes = [1, 32], strides = [1, 1]} : vector<6x32xf32> to vector<1x32xf32>
    %12 = vector.extract_strided_slice %10 {offsets = [1, 0], sizes = [1, 32], strides = [1, 1]} : vector<6x32xf32> to vector<1x32xf32>
    %13 = vector.extract_strided_slice %10 {offsets = [2, 0], sizes = [1, 32], strides = [1, 1]} : vector<6x32xf32> to vector<1x32xf32>
    %14 = vector.extract_strided_slice %10 {offsets = [3, 0], sizes = [1, 32], strides = [1, 1]} : vector<6x32xf32> to vector<1x32xf32>
    %15 = vector.extract_strided_slice %10 {offsets = [4, 0], sizes = [1, 32], strides = [1, 1]} : vector<6x32xf32> to vector<1x32xf32>
    %16 = vector.extract_strided_slice %10 {offsets = [5, 0], sizes = [1, 32], strides = [1, 1]} : vector<6x32xf32> to vector<1x32xf32>
    %17 = vector.shape_cast %1 : vector<8x32xf32> to vector<1x8x32xf32>
    %18 = vector.shape_cast %17 : vector<1x8x32xf32> to vector<1x8x32xf32>
    %19 = vector.broadcast %18 : vector<1x8x32xf32> to vector<4x8x32xf32>
    %c0_12 = arith.constant 0 : index
    %c0_13 = arith.constant 0 : index
    %c0_14 = arith.constant 0 : index
    %c0_15 = arith.constant 0 : index
    %20 = vector.load %arg3[%c0_12, %c0_13, %c0_14, %c0_15] : memref<6x4x32x8xf32, #tpu.memory_space<vmem>>, vector<1x4x32x8xf32>
    %21 = vector.shape_cast %20 : vector<1x4x32x8xf32> to vector<4x32x8xf32>
    "tpu.trace_start"() <{level = 10 : i32, message = "nsh,nhd->nsd"}> : () -> ()
    %cst = arith.constant dense<0.000000e+00> : vector<4x8x8xf32>
    %22 = tpu.matmul %19, %21, %cst {dimension_numbers = #tpu.dot_dimension_numbers<[2], [1], [1], [2], [0, 0, 0, 1, 1, 2], [0], [0]>} : vector<4x8x32xf32>, vector<4x32x8xf32>, vector<4x8x8xf32> -> vector<4x8x8xf32>
    "tpu.trace_stop"() : () -> ()
    %c0_16 = arith.constant 0 : index
    %c0_17 = arith.constant 0 : index
    %c0_18 = arith.constant 0 : index
    %c0_19 = arith.constant 0 : index
    %23 = vector.load %arg4[%c0_16, %c0_17, %c0_18, %c0_19] : memref<6x4x1x8xf32, #tpu.memory_space<vmem>>, vector<1x4x1x8xf32>
    %24 = vector.shape_cast %23 : vector<1x4x1x8xf32> to vector<4x1x8xf32>
    %25 = vector.broadcast %24 : vector<4x1x8xf32> to vector<4x8x8xf32>
    %26 = arith.addf %22, %25 : vector<4x8x8xf32>
    %c1 = arith.constant 1 : index
    %c0_20 = arith.constant 0 : index
    %c0_21 = arith.constant 0 : index
    %c0_22 = arith.constant 0 : index
    %27 = vector.load %arg3[%c1, %c0_20, %c0_21, %c0_22] : memref<6x4x32x8xf32, #tpu.memory_space<vmem>>, vector<1x4x32x8xf32>
    %28 = vector.shape_cast %27 : vector<1x4x32x8xf32> to vector<4x32x8xf32>
    "tpu.trace_start"() <{level = 10 : i32, message = "nsh,nhd->nsd"}> : () -> ()
    %cst_23 = arith.constant dense<0.000000e+00> : vector<4x8x8xf32>
    %29 = tpu.matmul %19, %28, %cst_23 {dimension_numbers = #tpu.dot_dimension_numbers<[2], [1], [1], [2], [0, 0, 0, 1, 1, 2], [0], [0]>} : vector<4x8x32xf32>, vector<4x32x8xf32>, vector<4x8x8xf32> -> vector<4x8x8xf32>
    "tpu.trace_stop"() : () -> ()
    %c1_24 = arith.constant 1 : index
    %c0_25 = arith.constant 0 : index
    %c0_26 = arith.constant 0 : index
    %c0_27 = arith.constant 0 : index
    %30 = vector.load %arg4[%c1_24, %c0_25, %c0_26, %c0_27] : memref<6x4x1x8xf32, #tpu.memory_space<vmem>>, vector<1x4x1x8xf32>
    %31 = vector.shape_cast %30 : vector<1x4x1x8xf32> to vector<4x1x8xf32>
    %32 = vector.broadcast %31 : vector<4x1x8xf32> to vector<4x8x8xf32>
    %33 = arith.addf %29, %32 : vector<4x8x8xf32>
    %c2 = arith.constant 2 : index
    %c0_28 = arith.constant 0 : index
    %c0_29 = arith.constant 0 : index
    %c0_30 = arith.constant 0 : index
    %34 = vector.load %arg3[%c2, %c0_28, %c0_29, %c0_30] : memref<6x4x32x8xf32, #tpu.memory_space<vmem>>, vector<1x4x32x8xf32>
    %35 = vector.shape_cast %34 : vector<1x4x32x8xf32> to vector<4x32x8xf32>
    "tpu.trace_start"() <{level = 10 : i32, message = "nsh,nhd->nsd"}> : () -> ()
    %cst_31 = arith.constant dense<0.000000e+00> : vector<4x8x8xf32>
    %36 = tpu.matmul %19, %35, %cst_31 {dimension_numbers = #tpu.dot_dimension_numbers<[2], [1], [1], [2], [0, 0, 0, 1, 1, 2], [0], [0]>} : vector<4x8x32xf32>, vector<4x32x8xf32>, vector<4x8x8xf32> -> vector<4x8x8xf32>
    "tpu.trace_stop"() : () -> ()
    %c2_32 = arith.constant 2 : index
    %c0_33 = arith.constant 0 : index
    %c0_34 = arith.constant 0 : index
    %c0_35 = arith.constant 0 : index
    %37 = vector.load %arg4[%c2_32, %c0_33, %c0_34, %c0_35] : memref<6x4x1x8xf32, #tpu.memory_space<vmem>>, vector<1x4x1x8xf32>
    %38 = vector.shape_cast %37 : vector<1x4x1x8xf32> to vector<4x1x8xf32>
    %39 = vector.broadcast %38 : vector<4x1x8xf32> to vector<4x8x8xf32>
    %40 = arith.addf %36, %39 : vector<4x8x8xf32>
    "tpu.trace_start"() <{level = 10 : i32, message = "nqd,nkd->nqk"}> : () -> ()
    %cst_36 = arith.constant dense<0.000000e+00> : vector<4x8x8xf32>
    %41 = tpu.matmul %26, %33, %cst_36 {dimension_numbers = #tpu.dot_dimension_numbers<[2], [2], [1], [1], [0, 0, 0, 1, 1, 1], [0], [0]>} : vector<4x8x8xf32>, vector<4x8x8xf32>, vector<4x8x8xf32> -> vector<4x8x8xf32>
    "tpu.trace_stop"() : () -> ()
    %cst_37 = arith.constant 0.353553385 : f32
    %42 = vector.broadcast %cst_37 : f32 to vector<4x8x8xf32>
    %43 = arith.mulf %41, %42 : vector<4x8x8xf32>
    %44 = arith.addf %43, %6 : vector<4x8x8xf32>
    %cst_38 = arith.constant dense<0xFF800000> : vector<4x8xf32>
    %45 = vector.multi_reduction <maximumf>, %44, %cst_38 [2] : vector<4x8x8xf32> to vector<4x8xf32>
    %46 = vector.shape_cast %45 : vector<4x8xf32> to vector<4x8x1xf32>
    %47 = vector.broadcast %46 : vector<4x8x1xf32> to vector<4x8x8xf32>
    %48 = arith.subf %44, %47 : vector<4x8x8xf32>
    %49 = math.exp %48 : vector<4x8x8xf32>
    %cst_39 = arith.constant dense<0.000000e+00> : vector<4x8xf32>
    %50 = vector.multi_reduction <add>, %49, %cst_39 [2] : vector<4x8x8xf32> to vector<4x8xf32>
    %51 = vector.shape_cast %50 : vector<4x8xf32> to vector<4x8x1xf32>
    %52 = tpu.reciprocal %51 {approx = true} : vector<4x8x1xf32> -> vector<4x8x1xf32>
    %53 = vector.broadcast %52 : vector<4x8x1xf32> to vector<4x8x8xf32>
    %54 = arith.mulf %49, %53 : vector<4x8x8xf32>
    "tpu.trace_start"() <{level = 10 : i32, message = "nqk,nkd->nqd"}> : () -> ()
    %cst_40 = arith.constant dense<0.000000e+00> : vector<4x8x8xf32>
    %55 = tpu.matmul %54, %40, %cst_40 {dimension_numbers = #tpu.dot_dimension_numbers<[2], [1], [1], [2], [0, 0, 0, 1, 1, 2], [0], [0]>} : vector<4x8x8xf32>, vector<4x8x8xf32>, vector<4x8x8xf32> -> vector<4x8x8xf32>
    "tpu.trace_stop"() : () -> ()
    "tpu.trace_start"() <{level = 10 : i32, message = "nqd,ndo->nqo"}> : () -> ()
    %cst_41 = arith.constant dense<0.000000e+00> : vector<4x8x32xf32>
    %56 = tpu.matmul %55, %8, %cst_41 {dimension_numbers = #tpu.dot_dimension_numbers<[2], [1], [1], [2], [0, 0, 0, 1, 1, 2], [0], [0]>} : vector<4x8x8xf32>, vector<4x8x32xf32>, vector<4x8x32xf32> -> vector<4x8x32xf32>
    "tpu.trace_stop"() : () -> ()
    %cst_42 = arith.constant dense<0.000000e+00> : vector<8x32xf32>
    %57 = vector.multi_reduction <add>, %56, %cst_42 [0] : vector<4x8x32xf32> to vector<8x32xf32>
    %58 = vector.broadcast %11 : vector<1x32xf32> to vector<8x32xf32>
    %59 = arith.addf %57, %58 : vector<8x32xf32>
    %60 = arith.addf %1, %59 : vector<8x32xf32>
    %cst_43 = arith.constant dense<0.000000e+00> : vector<8xf32>
    %61 = vector.multi_reduction <add>, %60, %cst_43 [1] : vector<8x32xf32> to vector<8xf32>
    %62 = vector.shape_cast %61 : vector<8xf32> to vector<8x1xf32>
    %cst_44 = arith.constant 3.200000e+01 : f32
    %63 = vector.broadcast %cst_44 : f32 to vector<8x1xf32>
    %64 = arith.divf %62, %63 : vector<8x1xf32>
    %65 = vector.broadcast %64 : vector<8x1xf32> to vector<8x32xf32>
    %66 = arith.subf %60, %65 : vector<8x32xf32>
    %67 = vector.broadcast %64 : vector<8x1xf32> to vector<8x32xf32>
    %68 = arith.subf %60, %67 : vector<8x32xf32>
    %69 = arith.mulf %66, %68 : vector<8x32xf32>
    %cst_45 = arith.constant dense<0.000000e+00> : vector<8xf32>
    %70 = vector.multi_reduction <add>, %69, %cst_45 [1] : vector<8x32xf32> to vector<8xf32>
    %71 = vector.shape_cast %70 : vector<8xf32> to vector<8x1xf32>
    %cst_46 = arith.constant 3.200000e+01 : f32
    %72 = vector.broadcast %cst_46 : f32 to vector<8x1xf32>
    %73 = arith.divf %71, %72 : vector<8x1xf32>
    %74 = vector.broadcast %64 : vector<8x1xf32> to vector<8x32xf32>
    %75 = arith.subf %60, %74 : vector<8x32xf32>
    %cst_47 = arith.constant 9.99999996E-13 : f32
    %76 = vector.broadcast %cst_47 : f32 to vector<8x1xf32>
    %77 = arith.addf %73, %76 : vector<8x1xf32>
    %78 = math.rsqrt %77 : vector<8x1xf32>
    %79 = vector.broadcast %78 : vector<8x1xf32> to vector<8x32xf32>
    %80 = arith.mulf %75, %79 : vector<8x32xf32>
    %81 = vector.broadcast %12 : vector<1x32xf32> to vector<8x32xf32>
    %82 = arith.mulf %80, %81 : vector<8x32xf32>
    %83 = vector.broadcast %13 : vector<1x32xf32> to vector<8x32xf32>
    %84 = arith.addf %82, %83 : vector<8x32xf32>
    %c0_48 = arith.constant 0 : index
    %c0_49 = arith.constant 0 : index
    %c0_50 = arith.constant 0 : index
    %85 = vector.load %arg6[%c0_48, %c0_49, %c0_50] : memref<2x32x64xf32, #tpu.memory_space<vmem>>, vector<1x32x64xf32>
    %86 = vector.shape_cast %85 : vector<1x32x64xf32> to vector<32x64xf32>
    %cst_51 = arith.constant dense<0.000000e+00> : vector<8x64xf32>
    %87 = tpu.matmul %84, %86, %cst_51 {dimension_numbers = #tpu.dot_dimension_numbers<[1], [0], [0], [1], [0, 0, 1, 1], [], []>} : vector<8x32xf32>, vector<32x64xf32>, vector<8x64xf32> -> vector<8x64xf32>
    %c0_52 = arith.constant 0 : index
    %c0_53 = arith.constant 0 : index
    %c0_54 = arith.constant 0 : index
    %88 = vector.load %arg7[%c0_52, %c0_53, %c0_54] : memref<2x1x64xf32, #tpu.memory_space<vmem>>, vector<1x1x64xf32>
    %89 = vector.shape_cast %88 : vector<1x1x64xf32> to vector<1x64xf32>
    %90 = vector.broadcast %89 : vector<1x64xf32> to vector<8x64xf32>
    %91 = arith.addf %87, %90 : vector<8x64xf32>
    %cst_55 = arith.constant 5.000000e-01 : f32
    %92 = vector.broadcast %cst_55 : f32 to vector<8x64xf32>
    %93 = arith.mulf %92, %91 : vector<8x64xf32>
    %cst_56 = arith.constant 2.000000e+00 : f32
    %94 = math.sqrt %cst_56 : f32
    %95 = vector.broadcast %94 : f32 to vector<8x64xf32>
    %96 = arith.divf %91, %95 : vector<8x64xf32>
    %97 = math.erf %96 : vector<8x64xf32>
    %cst_57 = arith.constant 1.000000e+00 : f32
    %98 = vector.broadcast %cst_57 : f32 to vector<8x64xf32>
    %99 = arith.addf %98, %97 : vector<8x64xf32>
    %100 = arith.mulf %93, %99 : vector<8x64xf32>
    %c0_58 = arith.constant 0 : index
    %c0_59 = arith.constant 0 : index
    %c0_60 = arith.constant 0 : index
    %101 = vector.load %arg8[%c0_58, %c0_59, %c0_60] : memref<2x64x32xf32, #tpu.memory_space<vmem>>, vector<1x64x32xf32>
    %102 = vector.shape_cast %101 : vector<1x64x32xf32> to vector<64x32xf32>
    %cst_61 = arith.constant dense<0.000000e+00> : vector<8x32xf32>
    %103 = tpu.matmul %100, %102, %cst_61 {dimension_numbers = #tpu.dot_dimension_numbers<[1], [0], [0], [1], [0, 0, 1, 1], [], []>} : vector<8x64xf32>, vector<64x32xf32>, vector<8x32xf32> -> vector<8x32xf32>
    %104 = vector.broadcast %14 : vector<1x32xf32> to vector<8x32xf32>
    %105 = arith.addf %103, %104 : vector<8x32xf32>
    %106 = arith.addf %84, %105 : vector<8x32xf32>
    %cst_62 = arith.constant dense<0.000000e+00> : vector<8xf32>
    %107 = vector.multi_reduction <add>, %106, %cst_62 [1] : vector<8x32xf32> to vector<8xf32>
    %108 = vector.shape_cast %107 : vector<8xf32> to vector<8x1xf32>
    %cst_63 = arith.constant 3.200000e+01 : f32
    %109 = vector.broadcast %cst_63 : f32 to vector<8x1xf32>
    %110 = arith.divf %108, %109 : vector<8x1xf32>
    %111 = vector.broadcast %110 : vector<8x1xf32> to vector<8x32xf32>
    %112 = arith.subf %106, %111 : vector<8x32xf32>
    %113 = vector.broadcast %110 : vector<8x1xf32> to vector<8x32xf32>
    %114 = arith.subf %106, %113 : vector<8x32xf32>
    %115 = arith.mulf %112, %114 : vector<8x32xf32>
    %cst_64 = arith.constant dense<0.000000e+00> : vector<8xf32>
    %116 = vector.multi_reduction <add>, %115, %cst_64 [1] : vector<8x32xf32> to vector<8xf32>
    %117 = vector.shape_cast %116 : vector<8xf32> to vector<8x1xf32>
    %cst_65 = arith.constant 3.200000e+01 : f32
    %118 = vector.broadcast %cst_65 : f32 to vector<8x1xf32>
    %119 = arith.divf %117, %118 : vector<8x1xf32>
    %120 = vector.broadcast %110 : vector<8x1xf32> to vector<8x32xf32>
    %121 = arith.subf %106, %120 : vector<8x32xf32>
    %cst_66 = arith.constant 9.99999996E-13 : f32
    %122 = vector.broadcast %cst_66 : f32 to vector<8x1xf32>
    %123 = arith.addf %119, %122 : vector<8x1xf32>
    %124 = math.rsqrt %123 : vector<8x1xf32>
    %125 = vector.broadcast %124 : vector<8x1xf32> to vector<8x32xf32>
    %126 = arith.mulf %121, %125 : vector<8x32xf32>
    %127 = vector.broadcast %15 : vector<1x32xf32> to vector<8x32xf32>
    %128 = arith.mulf %126, %127 : vector<8x32xf32>
    %129 = vector.broadcast %16 : vector<1x32xf32> to vector<8x32xf32>
    %130 = arith.addf %128, %129 : vector<8x32xf32>
    %c1_67 = arith.constant 1 : index
    %c0_68 = arith.constant 0 : index
    %c0_69 = arith.constant 0 : index
    %c0_70 = arith.constant 0 : index
    %131 = vector.load %arg5[%c1_67, %c0_68, %c0_69, %c0_70] : memref<2x4x8x32xf32, #tpu.memory_space<vmem>>, vector<1x4x8x32xf32>
    %132 = vector.shape_cast %131 : vector<1x4x8x32xf32> to vector<4x8x32xf32>
    %c1_71 = arith.constant 1 : index
    %c0_72 = arith.constant 0 : index
    %c0_73 = arith.constant 0 : index
    %133 = vector.load %arg9[%c1_71, %c0_72, %c0_73] : memref<2x6x32xf32, #tpu.memory_space<vmem>>, vector<1x6x32xf32>
    %134 = vector.shape_cast %133 : vector<1x6x32xf32> to vector<6x32xf32>
    %135 = vector.extract_strided_slice %134 {offsets = [0, 0], sizes = [1, 32], strides = [1, 1]} : vector<6x32xf32> to vector<1x32xf32>
    %136 = vector.extract_strided_slice %134 {offsets = [1, 0], sizes = [1, 32], strides = [1, 1]} : vector<6x32xf32> to vector<1x32xf32>
    %137 = vector.extract_strided_slice %134 {offsets = [2, 0], sizes = [1, 32], strides = [1, 1]} : vector<6x32xf32> to vector<1x32xf32>
    %138 = vector.extract_strided_slice %134 {offsets = [3, 0], sizes = [1, 32], strides = [1, 1]} : vector<6x32xf32> to vector<1x32xf32>
    %139 = vector.extract_strided_slice %134 {offsets = [4, 0], sizes = [1, 32], strides = [1, 1]} : vector<6x32xf32> to vector<1x32xf32>
    %140 = vector.extract_strided_slice %134 {offsets = [5, 0], sizes = [1, 32], strides = [1, 1]} : vector<6x32xf32> to vector<1x32xf32>
    %141 = vector.shape_cast %130 : vector<8x32xf32> to vector<1x8x32xf32>
    %142 = vector.shape_cast %141 : vector<1x8x32xf32> to vector<1x8x32xf32>
    %143 = vector.broadcast %142 : vector<1x8x32xf32> to vector<4x8x32xf32>
    %c3 = arith.constant 3 : index
    %c0_74 = arith.constant 0 : index
    %c0_75 = arith.constant 0 : index
    %c0_76 = arith.constant 0 : index
    %144 = vector.load %arg3[%c3, %c0_74, %c0_75, %c0_76] : memref<6x4x32x8xf32, #tpu.memory_space<vmem>>, vector<1x4x32x8xf32>
    %145 = vector.shape_cast %144 : vector<1x4x32x8xf32> to vector<4x32x8xf32>
    "tpu.trace_start"() <{level = 10 : i32, message = "nsh,nhd->nsd"}> : () -> ()
    %cst_77 = arith.constant dense<0.000000e+00> : vector<4x8x8xf32>
    %146 = tpu.matmul %143, %145, %cst_77 {dimension_numbers = #tpu.dot_dimension_numbers<[2], [1], [1], [2], [0, 0, 0, 1, 1, 2], [0], [0]>} : vector<4x8x32xf32>, vector<4x32x8xf32>, vector<4x8x8xf32> -> vector<4x8x8xf32>
    "tpu.trace_stop"() : () -> ()
    %c3_78 = arith.constant 3 : index
    %c0_79 = arith.constant 0 : index
    %c0_80 = arith.constant 0 : index
    %c0_81 = arith.constant 0 : index
    %147 = vector.load %arg4[%c3_78, %c0_79, %c0_80, %c0_81] : memref<6x4x1x8xf32, #tpu.memory_space<vmem>>, vector<1x4x1x8xf32>
    %148 = vector.shape_cast %147 : vector<1x4x1x8xf32> to vector<4x1x8xf32>
    %149 = vector.broadcast %148 : vector<4x1x8xf32> to vector<4x8x8xf32>
    %150 = arith.addf %146, %149 : vector<4x8x8xf32>
    %c4 = arith.constant 4 : index
    %c0_82 = arith.constant 0 : index
    %c0_83 = arith.constant 0 : index
    %c0_84 = arith.constant 0 : index
    %151 = vector.load %arg3[%c4, %c0_82, %c0_83, %c0_84] : memref<6x4x32x8xf32, #tpu.memory_space<vmem>>, vector<1x4x32x8xf32>
    %152 = vector.shape_cast %151 : vector<1x4x32x8xf32> to vector<4x32x8xf32>
    "tpu.trace_start"() <{level = 10 : i32, message = "nsh,nhd->nsd"}> : () -> ()
    %cst_85 = arith.constant dense<0.000000e+00> : vector<4x8x8xf32>
    %153 = tpu.matmul %143, %152, %cst_85 {dimension_numbers = #tpu.dot_dimension_numbers<[2], [1], [1], [2], [0, 0, 0, 1, 1, 2], [0], [0]>} : vector<4x8x32xf32>, vector<4x32x8xf32>, vector<4x8x8xf32> -> vector<4x8x8xf32>
    "tpu.trace_stop"() : () -> ()
    %c4_86 = arith.constant 4 : index
    %c0_87 = arith.constant 0 : index
    %c0_88 = arith.constant 0 : index
    %c0_89 = arith.constant 0 : index
    %154 = vector.load %arg4[%c4_86, %c0_87, %c0_88, %c0_89] : memref<6x4x1x8xf32, #tpu.memory_space<vmem>>, vector<1x4x1x8xf32>
    %155 = vector.shape_cast %154 : vector<1x4x1x8xf32> to vector<4x1x8xf32>
    %156 = vector.broadcast %155 : vector<4x1x8xf32> to vector<4x8x8xf32>
    %157 = arith.addf %153, %156 : vector<4x8x8xf32>
    %c5 = arith.constant 5 : index
    %c0_90 = arith.constant 0 : index
    %c0_91 = arith.constant 0 : index
    %c0_92 = arith.constant 0 : index
    %158 = vector.load %arg3[%c5, %c0_90, %c0_91, %c0_92] : memref<6x4x32x8xf32, #tpu.memory_space<vmem>>, vector<1x4x32x8xf32>
    %159 = vector.shape_cast %158 : vector<1x4x32x8xf32> to vector<4x32x8xf32>
    "tpu.trace_start"() <{level = 10 : i32, message = "nsh,nhd->nsd"}> : () -> ()
    %cst_93 = arith.constant dense<0.000000e+00> : vector<4x8x8xf32>
    %160 = tpu.matmul %143, %159, %cst_93 {dimension_numbers = #tpu.dot_dimension_numbers<[2], [1], [1], [2], [0, 0, 0, 1, 1, 2], [0], [0]>} : vector<4x8x32xf32>, vector<4x32x8xf32>, vector<4x8x8xf32> -> vector<4x8x8xf32>
    "tpu.trace_stop"() : () -> ()
    %c5_94 = arith.constant 5 : index
    %c0_95 = arith.constant 0 : index
    %c0_96 = arith.constant 0 : index
    %c0_97 = arith.constant 0 : index
    %161 = vector.load %arg4[%c5_94, %c0_95, %c0_96, %c0_97] : memref<6x4x1x8xf32, #tpu.memory_space<vmem>>, vector<1x4x1x8xf32>
    %162 = vector.shape_cast %161 : vector<1x4x1x8xf32> to vector<4x1x8xf32>
    %163 = vector.broadcast %162 : vector<4x1x8xf32> to vector<4x8x8xf32>
    %164 = arith.addf %160, %163 : vector<4x8x8xf32>
    "tpu.trace_start"() <{level = 10 : i32, message = "nqd,nkd->nqk"}> : () -> ()
    %cst_98 = arith.constant dense<0.000000e+00> : vector<4x8x8xf32>
    %165 = tpu.matmul %150, %157, %cst_98 {dimension_numbers = #tpu.dot_dimension_numbers<[2], [2], [1], [1], [0, 0, 0, 1, 1, 1], [0], [0]>} : vector<4x8x8xf32>, vector<4x8x8xf32>, vector<4x8x8xf32> -> vector<4x8x8xf32>
    "tpu.trace_stop"() : () -> ()
    %cst_99 = arith.constant 0.353553385 : f32
    %166 = vector.broadcast %cst_99 : f32 to vector<4x8x8xf32>
    %167 = arith.mulf %165, %166 : vector<4x8x8xf32>
    %168 = arith.addf %167, %6 : vector<4x8x8xf32>
    %cst_100 = arith.constant dense<0xFF800000> : vector<4x8xf32>
    %169 = vector.multi_reduction <maximumf>, %168, %cst_100 [2] : vector<4x8x8xf32> to vector<4x8xf32>
    %170 = vector.shape_cast %169 : vector<4x8xf32> to vector<4x8x1xf32>
    %171 = vector.broadcast %170 : vector<4x8x1xf32> to vector<4x8x8xf32>
    %172 = arith.subf %168, %171 : vector<4x8x8xf32>
    %173 = math.exp %172 : vector<4x8x8xf32>
    %cst_101 = arith.constant dense<0.000000e+00> : vector<4x8xf32>
    %174 = vector.multi_reduction <add>, %173, %cst_101 [2] : vector<4x8x8xf32> to vector<4x8xf32>
    %175 = vector.shape_cast %174 : vector<4x8xf32> to vector<4x8x1xf32>
    %176 = tpu.reciprocal %175 {approx = true} : vector<4x8x1xf32> -> vector<4x8x1xf32>
    %177 = vector.broadcast %176 : vector<4x8x1xf32> to vector<4x8x8xf32>
    %178 = arith.mulf %173, %177 : vector<4x8x8xf32>
    "tpu.trace_start"() <{level = 10 : i32, message = "nqk,nkd->nqd"}> : () -> ()
    %cst_102 = arith.constant dense<0.000000e+00> : vector<4x8x8xf32>
    %179 = tpu.matmul %178, %164, %cst_102 {dimension_numbers = #tpu.dot_dimension_numbers<[2], [1], [1], [2], [0, 0, 0, 1, 1, 2], [0], [0]>} : vector<4x8x8xf32>, vector<4x8x8xf32>, vector<4x8x8xf32> -> vector<4x8x8xf32>
    "tpu.trace_stop"() : () -> ()
    "tpu.trace_start"() <{level = 10 : i32, message = "nqd,ndo->nqo"}> : () -> ()
    %cst_103 = arith.constant dense<0.000000e+00> : vector<4x8x32xf32>
    %180 = tpu.matmul %179, %132, %cst_103 {dimension_numbers = #tpu.dot_dimension_numbers<[2], [1], [1], [2], [0, 0, 0, 1, 1, 2], [0], [0]>} : vector<4x8x8xf32>, vector<4x8x32xf32>, vector<4x8x32xf32> -> vector<4x8x32xf32>
    "tpu.trace_stop"() : () -> ()
    %cst_104 = arith.constant dense<0.000000e+00> : vector<8x32xf32>
    %181 = vector.multi_reduction <add>, %180, %cst_104 [0] : vector<4x8x32xf32> to vector<8x32xf32>
    %182 = vector.broadcast %135 : vector<1x32xf32> to vector<8x32xf32>
    %183 = arith.addf %181, %182 : vector<8x32xf32>
    %184 = arith.addf %130, %183 : vector<8x32xf32>
    %cst_105 = arith.constant dense<0.000000e+00> : vector<8xf32>
    %185 = vector.multi_reduction <add>, %184, %cst_105 [1] : vector<8x32xf32> to vector<8xf32>
    %186 = vector.shape_cast %185 : vector<8xf32> to vector<8x1xf32>
    %cst_106 = arith.constant 3.200000e+01 : f32
    %187 = vector.broadcast %cst_106 : f32 to vector<8x1xf32>
    %188 = arith.divf %186, %187 : vector<8x1xf32>
    %189 = vector.broadcast %188 : vector<8x1xf32> to vector<8x32xf32>
    %190 = arith.subf %184, %189 : vector<8x32xf32>
    %191 = vector.broadcast %188 : vector<8x1xf32> to vector<8x32xf32>
    %192 = arith.subf %184, %191 : vector<8x32xf32>
    %193 = arith.mulf %190, %192 : vector<8x32xf32>
    %cst_107 = arith.constant dense<0.000000e+00> : vector<8xf32>
    %194 = vector.multi_reduction <add>, %193, %cst_107 [1] : vector<8x32xf32> to vector<8xf32>
    %195 = vector.shape_cast %194 : vector<8xf32> to vector<8x1xf32>
    %cst_108 = arith.constant 3.200000e+01 : f32
    %196 = vector.broadcast %cst_108 : f32 to vector<8x1xf32>
    %197 = arith.divf %195, %196 : vector<8x1xf32>
    %198 = vector.broadcast %188 : vector<8x1xf32> to vector<8x32xf32>
    %199 = arith.subf %184, %198 : vector<8x32xf32>
    %cst_109 = arith.constant 9.99999996E-13 : f32
    %200 = vector.broadcast %cst_109 : f32 to vector<8x1xf32>
    %201 = arith.addf %197, %200 : vector<8x1xf32>
    %202 = math.rsqrt %201 : vector<8x1xf32>
    %203 = vector.broadcast %202 : vector<8x1xf32> to vector<8x32xf32>
    %204 = arith.mulf %199, %203 : vector<8x32xf32>
    %205 = vector.broadcast %136 : vector<1x32xf32> to vector<8x32xf32>
    %206 = arith.mulf %204, %205 : vector<8x32xf32>
    %207 = vector.broadcast %137 : vector<1x32xf32> to vector<8x32xf32>
    %208 = arith.addf %206, %207 : vector<8x32xf32>
    %c1_110 = arith.constant 1 : index
    %c0_111 = arith.constant 0 : index
    %c0_112 = arith.constant 0 : index
    %209 = vector.load %arg6[%c1_110, %c0_111, %c0_112] : memref<2x32x64xf32, #tpu.memory_space<vmem>>, vector<1x32x64xf32>
    %210 = vector.shape_cast %209 : vector<1x32x64xf32> to vector<32x64xf32>
    %cst_113 = arith.constant dense<0.000000e+00> : vector<8x64xf32>
    %211 = tpu.matmul %208, %210, %cst_113 {dimension_numbers = #tpu.dot_dimension_numbers<[1], [0], [0], [1], [0, 0, 1, 1], [], []>} : vector<8x32xf32>, vector<32x64xf32>, vector<8x64xf32> -> vector<8x64xf32>
    %c1_114 = arith.constant 1 : index
    %c0_115 = arith.constant 0 : index
    %c0_116 = arith.constant 0 : index
    %212 = vector.load %arg7[%c1_114, %c0_115, %c0_116] : memref<2x1x64xf32, #tpu.memory_space<vmem>>, vector<1x1x64xf32>
    %213 = vector.shape_cast %212 : vector<1x1x64xf32> to vector<1x64xf32>
    %214 = vector.broadcast %213 : vector<1x64xf32> to vector<8x64xf32>
    %215 = arith.addf %211, %214 : vector<8x64xf32>
    %cst_117 = arith.constant 5.000000e-01 : f32
    %216 = vector.broadcast %cst_117 : f32 to vector<8x64xf32>
    %217 = arith.mulf %216, %215 : vector<8x64xf32>
    %cst_118 = arith.constant 2.000000e+00 : f32
    %218 = math.sqrt %cst_118 : f32
    %219 = vector.broadcast %218 : f32 to vector<8x64xf32>
    %220 = arith.divf %215, %219 : vector<8x64xf32>
    %221 = math.erf %220 : vector<8x64xf32>
    %cst_119 = arith.constant 1.000000e+00 : f32
    %222 = vector.broadcast %cst_119 : f32 to vector<8x64xf32>
    %223 = arith.addf %222, %221 : vector<8x64xf32>
    %224 = arith.mulf %217, %223 : vector<8x64xf32>
    %c1_120 = arith.constant 1 : index
    %c0_121 = arith.constant 0 : index
    %c0_122 = arith.constant 0 : index
    %225 = vector.load %arg8[%c1_120, %c0_121, %c0_122] : memref<2x64x32xf32, #tpu.memory_space<vmem>>, vector<1x64x32xf32>
    %226 = vector.shape_cast %225 : vector<1x64x32xf32> to vector<64x32xf32>
    %cst_123 = arith.constant dense<0.000000e+00> : vector<8x32xf32>
    %227 = tpu.matmul %224, %226, %cst_123 {dimension_numbers = #tpu.dot_dimension_numbers<[1], [0], [0], [1], [0, 0, 1, 1], [], []>} : vector<8x64xf32>, vector<64x32xf32>, vector<8x32xf32> -> vector<8x32xf32>
    %228 = vector.broadcast %138 : vector<1x32xf32> to vector<8x32xf32>
    %229 = arith.addf %227, %228 : vector<8x32xf32>
    %230 = arith.addf %208, %229 : vector<8x32xf32>
    %cst_124 = arith.constant dense<0.000000e+00> : vector<8xf32>
    %231 = vector.multi_reduction <add>, %230, %cst_124 [1] : vector<8x32xf32> to vector<8xf32>
    %232 = vector.shape_cast %231 : vector<8xf32> to vector<8x1xf32>
    %cst_125 = arith.constant 3.200000e+01 : f32
    %233 = vector.broadcast %cst_125 : f32 to vector<8x1xf32>
    %234 = arith.divf %232, %233 : vector<8x1xf32>
    %235 = vector.broadcast %234 : vector<8x1xf32> to vector<8x32xf32>
    %236 = arith.subf %230, %235 : vector<8x32xf32>
    %237 = vector.broadcast %234 : vector<8x1xf32> to vector<8x32xf32>
    %238 = arith.subf %230, %237 : vector<8x32xf32>
    %239 = arith.mulf %236, %238 : vector<8x32xf32>
    %cst_126 = arith.constant dense<0.000000e+00> : vector<8xf32>
    %240 = vector.multi_reduction <add>, %239, %cst_126 [1] : vector<8x32xf32> to vector<8xf32>
    %241 = vector.shape_cast %240 : vector<8xf32> to vector<8x1xf32>
    %cst_127 = arith.constant 3.200000e+01 : f32
    %242 = vector.broadcast %cst_127 : f32 to vector<8x1xf32>
    %243 = arith.divf %241, %242 : vector<8x1xf32>
    %244 = vector.broadcast %234 : vector<8x1xf32> to vector<8x32xf32>
    %245 = arith.subf %230, %244 : vector<8x32xf32>
    %cst_128 = arith.constant 9.99999996E-13 : f32
    %246 = vector.broadcast %cst_128 : f32 to vector<8x1xf32>
    %247 = arith.addf %243, %246 : vector<8x1xf32>
    %248 = math.rsqrt %247 : vector<8x1xf32>
    %249 = vector.broadcast %248 : vector<8x1xf32> to vector<8x32xf32>
    %250 = arith.mulf %245, %249 : vector<8x32xf32>
    %251 = vector.broadcast %139 : vector<1x32xf32> to vector<8x32xf32>
    %252 = arith.mulf %250, %251 : vector<8x32xf32>
    %253 = vector.broadcast %140 : vector<1x32xf32> to vector<8x32xf32>
    %254 = arith.addf %252, %253 : vector<8x32xf32>
    %c0_129 = arith.constant 0 : index
    %c0_130 = arith.constant 0 : index
    %255 = vector.load %arg10[%c0_129, %c0_130] : memref<32x2xf32, #tpu.memory_space<vmem>>, vector<32x2xf32>
    %cst_131 = arith.constant dense<0.000000e+00> : vector<8x2xf32>
    %256 = tpu.matmul %254, %255, %cst_131 {dimension_numbers = #tpu.dot_dimension_numbers<[1], [0], [0], [1], [0, 0, 1, 1], [], []>} : vector<8x32xf32>, vector<32x2xf32>, vector<8x2xf32> -> vector<8x2xf32>
    %c0_132 = arith.constant 0 : index
    %c0_133 = arith.constant 0 : index
    %257 = vector.load %arg11[%c0_132, %c0_133] : memref<1x2xf32, #tpu.memory_space<vmem>>, vector<1x2xf32>
    %258 = vector.broadcast %257 : vector<1x2xf32> to vector<8x2xf32>
    %259 = arith.addf %256, %258 : vector<8x2xf32>
    %c0_134 = arith.constant 0 : index
    %c0_135 = arith.constant 0 : index
    %c0_136 = arith.constant 0 : index
    %260 = vector.load %arg12[%c0_134, %c0_135, %c0_136] : memref<1x8x2xf32, #tpu.memory_space<vmem>>, vector<1x8x2xf32>
    %261 = vector.shape_cast %260 : vector<1x8x2xf32> to vector<8x2xf32>
    %262 = vector.shape_cast %259 : vector<8x2xf32> to vector<1x8x2xf32>
    tpu.vector_store %arg12[%c0_134, %c0_135, %c0_136], %262 {strides = array<i32>} : memref<1x8x2xf32, #tpu.memory_space<vmem>>, vector<1x8x2xf32>,
    return
  }
  func.func @transform_0(%arg0: i32) -> (i32, i32, i32) {
    %c0_i32 = arith.constant 0 : i32
    %c0_i32_0 = arith.constant 0 : i32
    %c0_i32_1 = arith.constant 0 : i32
    return %arg0, %c0_i32, %c0_i32_0 : i32, i32, i32
  }
  func.func @transform_1(%arg0: i32) -> (i32, i32, i32) {
    %c0_i32 = arith.constant 0 : i32
    %c0_i32_0 = arith.constant 0 : i32
    %c0_i32_1 = arith.constant 0 : i32
    return %arg0, %c0_i32, %c0_i32_0 : i32, i32, i32
  }
  func.func @transform_2(%arg0: i32) -> (i32, i32, i32, i32) {
    %c0_i32 = arith.constant 0 : i32
    %c0_i32_0 = arith.constant 0 : i32
    %c0_i32_1 = arith.constant 0 : i32
    %c0_i32_2 = arith.constant 0 : i32
    %c0_i32_3 = arith.constant 0 : i32
    return %c0_i32, %c0_i32_0, %c0_i32_1, %c0_i32_2 : i32, i32, i32, i32
  }
  func.func @transform_3(%arg0: i32) -> (i32, i32, i32, i32) {
    %c0_i32 = arith.constant 0 : i32
    %c0_i32_0 = arith.constant 0 : i32
    %c0_i32_1 = arith.constant 0 : i32
    %c0_i32_2 = arith.constant 0 : i32
    %c0_i32_3 = arith.constant 0 : i32
    return %c0_i32, %c0_i32_0, %c0_i32_1, %c0_i32_2 : i32, i32, i32, i32
  }
  func.func @transform_4(%arg0: i32) -> (i32, i32, i32, i32) {
    %c0_i32 = arith.constant 0 : i32
    %c0_i32_0 = arith.constant 0 : i32
    %c0_i32_1 = arith.constant 0 : i32
    %c0_i32_2 = arith.constant 0 : i32
    %c0_i32_3 = arith.constant 0 : i32
    return %c0_i32, %c0_i32_0, %c0_i32_1, %c0_i32_2 : i32, i32, i32, i32
  }
  func.func @transform_5(%arg0: i32) -> (i32, i32, i32) {
    %c0_i32 = arith.constant 0 : i32
    %c0_i32_0 = arith.constant 0 : i32
    %c0_i32_1 = arith.constant 0 : i32
    %c0_i32_2 = arith.constant 0 : i32
    return %c0_i32, %c0_i32_0, %c0_i32_1 : i32, i32, i32
  }
  func.func @transform_6(%arg0: i32) -> (i32, i32, i32) {
    %c0_i32 = arith.constant 0 : i32
    %c0_i32_0 = arith.constant 0 : i32
    %c0_i32_1 = arith.constant 0 : i32
    %c0_i32_2 = arith.constant 0 : i32
    return %c0_i32, %c0_i32_0, %c0_i32_1 : i32, i32, i32
  }
  func.func @transform_7(%arg0: i32) -> (i32, i32, i32) {
    %c0_i32 = arith.constant 0 : i32
    %c0_i32_0 = arith.constant 0 : i32
    %c0_i32_1 = arith.constant 0 : i32
    %c0_i32_2 = arith.constant 0 : i32
    return %c0_i32, %c0_i32_0, %c0_i32_1 : i32, i32, i32
  }
  func.func @transform_8(%arg0: i32) -> (i32, i32, i32) {
    %c0_i32 = arith.constant 0 : i32
    %c0_i32_0 = arith.constant 0 : i32
    %c0_i32_1 = arith.constant 0 : i32
    %c0_i32_2 = arith.constant 0 : i32
    return %c0_i32, %c0_i32_0, %c0_i32_1 : i32, i32, i32
  }
  func.func @transform_9(%arg0: i32) -> (i32, i32) {
    %c0_i32 = arith.constant 0 : i32
    %c0_i32_0 = arith.constant 0 : i32
    %c0_i32_1 = arith.constant 0 : i32
    return %c0_i32, %c0_i32_0 : i32, i32
  }
  func.func @transform_10(%arg0: i32) -> (i32, i32) {
    %c0_i32 = arith.constant 0 : i32
    %c0_i32_0 = arith.constant 0 : i32
    %c0_i32_1 = arith.constant 0 : i32
    return %c0_i32, %c0_i32_0 : i32, i32
  }
  func.func @transform_11(%arg0: i32) -> (i32, i32, i32) {
    %c0_i32 = arith.constant 0 : i32
    %c0_i32_0 = arith.constant 0 : i32
    %c0_i32_1 = arith.constant 0 : i32
    return %arg0, %c0_i32, %c0_i32_0 : i32, i32, i32
  }
}

</mosaic_0001>

<llo_original>
// kernel: tpu_custom_call.1
$region0: #{tpu_custom_call.1}
  #allocation0 [shape = 'u32[]', space=smem, size = 0x4, offset = 0x4, fixed_abs, tag = 'smem constant byte address 0x4 - core index']
  #allocation1 [shape = 'u32[72,128]{1,0:T(1,128)}', space=vmem, size = 0x9000, scoped, tag = 'internal scratch']
  %s0 = inlined_call_operand.vmem [shape: f32[2,8,32], index: 0, kind: input, shape index: {}]
  %s1 = inlined_call_operand.vmem [shape: f32[2,1,8], index: 1, kind: input, shape index: {}]
  %s2 = inlined_call_operand.vmem [shape: f32[6,4,32,8], index: 2, kind: input, shape index: {}]
  %s3 = inlined_call_operand.vmem [shape: f32[6,4,1,8], index: 3, kind: input, shape index: {}]
  %s4 = inlined_call_operand.vmem [shape: f32[2,4,8,32], index: 4, kind: input, shape index: {}]
  %s5 = inlined_call_operand.vmem [shape: f32[2,32,64], index: 5, kind: input, shape index: {}]
  %s6 = inlined_call_operand.vmem [shape: f32[2,1,64], index: 6, kind: input, shape index: {}]
  %s7 = inlined_call_operand.vmem [shape: f32[2,64,32], index: 7, kind: input, shape index: {}]
  %s8 = inlined_call_operand.vmem [shape: f32[2,6,32], index: 8, kind: input, shape index: {}]
  %s9 = inlined_call_operand.vmem [shape: f32[32,2], index: 9, kind: input, shape index: {}]
  %s10 = inlined_call_operand.vmem [shape: f32[1,2], index: 10, kind: input, shape index: {}]
  %s11 = inlined_call_operand.vmem [shape: f32[2,8,2], index: 11, kind: output, shape index: {}]
  %s12 = sld [smem:[#allocation0]]
  $region77: #{tpu_custom_call.1} parent=0
    _
  %s14 = ssub.s32 1, %s12
  %s15 = scalar_select 0, %s14, %s12
  loop: start=0, step=1, limit=4
  $region2: #{tpu_custom_call.1} parent=0 // loop_pre_header
    _
  $region3: #{tpu_custom_call.1} parent=0 // loop_header
    %s17 = sphi 0, %s21
    %p18 = scmp.ge.s32.totalorder %s17, 4
    %s27 = sphi 0, %s29
    %s30 = sphi 0, %s27
    %s31 = sphi 0, %s30
    %s47 = sphi 0, %s31
    %s53 = sphi 0, %s55
    %s56 = sphi 0, %s53
    %s57 = sphi 0, %s56
    %s73 = sphi 0, %s57
    %s77 = sphi 0, %s77
    %s79 = sphi 0, %s77
    %s80 = sphi 0, %s79
    %s94 = sphi 0, %s80
    %s98 = sphi 0, %s98
    %s100 = sphi 0, %s98
    %s101 = sphi 0, %s100
    %s115 = sphi 0, %s101
    %s119 = sphi 0, %s119
    %s121 = sphi 0, %s119
    %s122 = sphi 0, %s121
    %s136 = sphi 0, %s122
    %s140 = sphi 0, %s140
    %s142 = sphi 0, %s140
    %s143 = sphi 0, %s142
    %s157 = sphi 0, %s143
    %s161 = sphi 0, %s161
    %s163 = sphi 0, %s161
    %s164 = sphi 0, %s163
    %s178 = sphi 0, %s164
    %s182 = sphi 0, %s182
    %s184 = sphi 0, %s182
    %s185 = sphi 0, %s184
    %s199 = sphi 0, %s185
    %s203 = sphi 0, %s203
    %s205 = sphi 0, %s203
    %s206 = sphi 0, %s205
    %s220 = sphi 0, %s206
    %s224 = sphi 0, %s224
    %s226 = sphi 0, %s224
    %s227 = sphi 0, %s226
    %s241 = sphi 0, %s227
    %s245 = sphi 0, %s245
    %s247 = sphi 0, %s245
    %s248 = sphi 0, %s247
    %s262 = sphi 0, %s248
    %s268 = sphi 0, %s270
    %s271 = sphi 0, %s268
    %s272 = sphi 0, %s271
    %s288 = sphi 0, %s272
  $region4: #{tpu_custom_call.1} parent=0 // loop_header_branch
    %20 = sbr.rel (%p18) target = $region8
  $region5: #{tpu_custom_call.1} parent=0 // loop_body
    %s22 = ssub.s32 %s17, 1
    %s23 = ssub.s32 %s17, 2
    %s24 = sadd.s32 %s17, 1
    %s25 = ssub.s32 %s17, %s24
    %p26 = scmp.eq.s32.totalorder %s25, 0
    %s28 = sadd.s32 %s27, 1
    %s29 = scalar_select %p26, %s27, %s28
    %p32 = pneg %p26
    %p33 = scmp.eq.s32.totalorder %s17, 1
    %p34 = por %p32, %p33
    %p35 = scmp.ne.s32.totalorder %s27, %s30
    %p36 = scmp.eq.s32.totalorder %s17, 0
    %p37 = por %p35, %p36
    %p38 = scmp.ne.s32.totalorder %s27, %s30
    %p39 = scmp.eq.s32.totalorder %s22, 1
    %p40 = por %p38, %p39
    %p41 = scmp.ne.s32.totalorder %s30, %s31
    %p42 = scmp.eq.s32.totalorder %s22, 0
    %p43 = por %p41, %p42
    %p44 = scmp.ne.s32.totalorder %s30, %s31
    %p45 = scmp.eq.s32.totalorder %s23, 1
    %p46 = por %p44, %p45
    %p48 = scmp.ne.s32.totalorder %s31, %s47
    %p49 = scmp.eq.s32.totalorder %s23, 0
    %p50 = por %p48, %p49
    %s51 = ssub.s32 %s17, %s24
    %p52 = scmp.eq.s32.totalorder %s51, 0
    %s54 = sadd.s32 %s53, 1
    %s55 = scalar_select %p52, %s53, %s54
    %p58 = pneg %p52
    %p59 = scmp.eq.s32.totalorder %s17, 1
    %p60 = por %p58, %p59
    %p61 = scmp.ne.s32.totalorder %s53, %s56
    %p62 = scmp.eq.s32.totalorder %s17, 0
    %p63 = por %p61, %p62
    %p64 = scmp.ne.s32.totalorder %s53, %s56
    %p65 = scmp.eq.s32.totalorder %s22, 1
    %p66 = por %p64, %p65
    %p67 = scmp.ne.s32.totalorder %s56, %s57
    %p68 = scmp.eq.s32.totalorder %s22, 0
    %p69 = por %p67, %p68
    %p70 = scmp.ne.s32.totalorder %s56, %s57
    %p71 = scmp.eq.s32.totalorder %s23, 1
    %p72 = por %p70, %p71
    %p74 = scmp.ne.s32.totalorder %s57, %s73
    %p75 = scmp.eq.s32.totalorder %s23, 0
    %p76 = por %p74, %p75
    %s78 = sadd.s32 %s77, 1
    %p81 = scmp.eq.s32.totalorder %s17, 1
    %p82 = scmp.ne.s32.totalorder %s77, %s79
    %p83 = scmp.eq.s32.totalorder %s17, 0
    %p84 = por %p82, %p83
    %p85 = scmp.ne.s32.totalorder %s77, %s79
    %p86 = scmp.eq.s32.totalorder %s22, 1
    %p87 = por %p85, %p86
    %p88 = scmp.ne.s32.totalorder %s79, %s80
    %p89 = scmp.eq.s32.totalorder %s22, 0
    %p90 = por %p88, %p89
    %p91 = scmp.ne.s32.totalorder %s79, %s80
    %p92 = scmp.eq.s32.totalorder %s23, 1
    %p93 = por %p91, %p92
    %p95 = scmp.ne.s32.totalorder %s80, %s94
    %p96 = scmp.eq.s32.totalorder %s23, 0
    %p97 = por %p95, %p96
    %s99 = sadd.s32 %s98, 1
    %p102 = scmp.eq.s32.totalorder %s17, 1
    %p103 = scmp.ne.s32.totalorder %s98, %s100
    %p104 = scmp.eq.s32.totalorder %s17, 0
    %p105 = por %p103, %p104
    %p106 = scmp.ne.s32.totalorder %s98, %s100
    %p107 = scmp.eq.s32.totalorder %s22, 1
    %p108 = por %p106, %p107
    %p109 = scmp.ne.s32.totalorder %s100, %s101
    %p110 = scmp.eq.s32.totalorder %s22, 0
    %p111 = por %p109, %p110
    %p112 = scmp.ne.s32.totalorder %s100, %s101
    %p113 = scmp.eq.s32.totalorder %s23, 1
    %p114 = por %p112, %p113
    %p116 = scmp.ne.s32.totalorder %s101, %s115
    %p117 = scmp.eq.s32.totalorder %s23, 0
    %p118 = por %p116, %p117
    %s120 = sadd.s32 %s119, 1
    %p123 = scmp.eq.s32.totalorder %s17, 1
    %p124 = scmp.ne.s32.totalorder %s119, %s121
    %p125 = scmp.eq.s32.totalorder %s17, 0
    %p126 = por %p124, %p125
    %p127 = scmp.ne.s32.totalorder %s119, %s121
    %p128 = scmp.eq.s32.totalorder %s22, 1
    %p129 = por %p127, %p128
    %p130 = scmp.ne.s32.totalorder %s121, %s122
    %p131 = scmp.eq.s32.totalorder %s22, 0
    %p132 = por %p130, %p131
    %p133 = scmp.ne.s32.totalorder %s121, %s122
    %p134 = scmp.eq.s32.totalorder %s23, 1
    %p135 = por %p133, %p134
    %p137 = scmp.ne.s32.totalorder %s122, %s136
    %p138 = scmp.eq.s32.totalorder %s23, 0
    %p139 = por %p137, %p138
    %s141 = sadd.s32 %s140, 1
    %p144 = scmp.eq.s32.totalorder %s17, 1
    %p145 = scmp.ne.s32.totalorder %s140, %s142
    %p146 = scmp.eq.s32.totalorder %s17, 0
    %p147 = por %p145, %p146
    %p148 = scmp.ne.s32.totalorder %s140, %s142
    %p149 = scmp.eq.s32.totalorder %s22, 1
    %p150 = por %p148, %p149
    %p151 = scmp.ne.s32.totalorder %s142, %s143
    %p152 = scmp.eq.s32.totalorder %s22, 0
    %p153 = por %p151, %p152
    %p154 = scmp.ne.s32.totalorder %s142, %s143
    %p155 = scmp.eq.s32.totalorder %s23, 1
    %p156 = por %p154, %p155
    %p158 = scmp.ne.s32.totalorder %s143, %s157
    %p159 = scmp.eq.s32.totalorder %s23, 0
    %p160 = por %p158, %p159
    %s162 = sadd.s32 %s161, 1
    %p165 = scmp.eq.s32.totalorder %s17, 1
    %p166 = scmp.ne.s32.totalorder %s161, %s163
    %p167 = scmp.eq.s32.totalorder %s17, 0
    %p168 = por %p166, %p167
    %p169 = scmp.ne.s32.totalorder %s161, %s163
    %p170 = scmp.eq.s32.totalorder %s22, 1
    %p171 = por %p169, %p170
    %p172 = scmp.ne.s32.totalorder %s163, %s164
    %p173 = scmp.eq.s32.totalorder %s22, 0
    %p174 = por %p172, %p173
    %p175 = scmp.ne.s32.totalorder %s163, %s164
    %p176 = scmp.eq.s32.totalorder %s23, 1
    %p177 = por %p175, %p176
    %p179 = scmp.ne.s32.totalorder %s164, %s178
    %p180 = scmp.eq.s32.totalorder %s23, 0
    %p181 = por %p179, %p180
    %s183 = sadd.s32 %s182, 1
    %p186 = scmp.eq.s32.totalorder %s17, 1
    %p187 = scmp.ne.s32.totalorder %s182, %s184
    %p188 = scmp.eq.s32.totalorder %s17, 0
    %p189 = por %p187, %p188
    %p190 = scmp.ne.s32.totalorder %s182, %s184
    %p191 = scmp.eq.s32.totalorder %s22, 1
    %p192 = por %p190, %p191
    %p193 = scmp.ne.s32.totalorder %s184, %s185
    %p194 = scmp.eq.s32.totalorder %s22, 0
    %p195 = por %p193, %p194
    %p196 = scmp.ne.s32.totalorder %s184, %s185
    %p197 = scmp.eq.s32.totalorder %s23, 1
    %p198 = por %p196, %p197
    %p200 = scmp.ne.s32.totalorder %s185, %s199
    %p201 = scmp.eq.s32.totalorder %s23, 0
    %p202 = por %p200, %p201
    %s204 = sadd.s32 %s203, 1
    %p207 = scmp.eq.s32.totalorder %s17, 1
    %p208 = scmp.ne.s32.totalorder %s203, %s205
    %p209 = scmp.eq.s32.totalorder %s17, 0
    %p210 = por %p208, %p209
    %p211 = scmp.ne.s32.totalorder %s203, %s205
    %p212 = scmp.eq.s32.totalorder %s22, 1
    %p213 = por %p211, %p212
    %p214 = scmp.ne.s32.totalorder %s205, %s206
    %p215 = scmp.eq.s32.totalorder %s22, 0
    %p216 = por %p214, %p215
    %p217 = scmp.ne.s32.totalorder %s205, %s206
    %p218 = scmp.eq.s32.totalorder %s23, 1
    %p219 = por %p217, %p218
    %p221 = scmp.ne.s32.totalorder %s206, %s220
    %p222 = scmp.eq.s32.totalorder %s23, 0
    %p223 = por %p221, %p222
    %s225 = sadd.s32 %s224, 1
    %p228 = scmp.eq.s32.totalorder %s17, 1
    %p229 = scmp.ne.s32.totalorder %s224, %s226
    %p230 = scmp.eq.s32.totalorder %s17, 0
    %p231 = por %p229, %p230
    %p232 = scmp.ne.s32.totalorder %s224, %s226
    %p233 = scmp.eq.s32.totalorder %s22, 1
    %p234 = por %p232, %p233
    %p235 = scmp.ne.s32.totalorder %s226, %s227
    %p236 = scmp.eq.s32.totalorder %s22, 0
    %p237 = por %p235, %p236
    %p238 = scmp.ne.s32.totalorder %s226, %s227
    %p239 = scmp.eq.s32.totalorder %s23, 1
    %p240 = por %p238, %p239
    %p242 = scmp.ne.s32.totalorder %s227, %s241
    %p243 = scmp.eq.s32.totalorder %s23, 0
    %p244 = por %p242, %p243
    %s246 = sadd.s32 %s245, 1
    %p249 = scmp.eq.s32.totalorder %s17, 1
    %p250 = scmp.ne.s32.totalorder %s245, %s247
    %p251 = scmp.eq.s32.totalorder %s17, 0
    %p252 = por %p250, %p251
    %p253 = scmp.ne.s32.totalorder %s245, %s247
    %p254 = scmp.eq.s32.totalorder %s22, 1
    %p255 = por %p253, %p254
    %p256 = scmp.ne.s32.totalorder %s247, %s248
    %p257 = scmp.eq.s32.totalorder %s22, 0
    %p258 = por %p256, %p257
    %p259 = scmp.ne.s32.totalorder %s247, %s248
    %p260 = scmp.eq.s32.totalorder %s23, 1
    %p261 = por %p259, %p260
    %p263 = scmp.ne.s32.totalorder %s248, %s262
    %p264 = scmp.eq.s32.totalorder %s23, 0
    %p265 = por %p263, %p264
    %s266 = ssub.s32 %s17, %s24
    %p267 = scmp.eq.s32.totalorder %s266, 0
    %s269 = sadd.s32 %s268, 1
    %s270 = scalar_select %p267, %s268, %s269
    %p273 = pneg %p267
    %p274 = scmp.eq.s32.totalorder %s17, 1
    %p275 = por %p273, %p274
    %p276 = scmp.ne.s32.totalorder %s268, %s271
    %p277 = scmp.eq.s32.totalorder %s17, 0
    %p278 = por %p276, %p277
    %p279 = scmp.ne.s32.totalorder %s268, %s271
    %p280 = scmp.eq.s32.totalorder %s22, 1
    %p281 = por %p279, %p280
    %p282 = scmp.ne.s32.totalorder %s271, %s272
    %p283 = scmp.eq.s32.totalorder %s22, 0
    %p284 = por %p282, %p283
    %p285 = scmp.ne.s32.totalorder %s271, %s272
    %p286 = scmp.eq.s32.totalorder %s23, 1
    %p287 = por %p285, %p286
    %p289 = scmp.ne.s32.totalorder %s272, %s288
    %p290 = scmp.eq.s32.totalorder %s23, 0
    %p291 = por %p289, %p290
    %p292 = scmp.le.s32.totalorder 1, %s17
    %p293 = scmp.lt.s32.totalorder %s17, 3
    %p294 = pnand %p292, %p293
    %p295 = pneg %p294
    // Predicated region
    $region9: #{tpu_custom_call.1} parent=5 // pred_check
      _
    $region10: #{tpu_custom_call.1} parent=5 // pred_check_branch
      %297 = sbr.rel (%p294) target = $region12
    $region11: #{tpu_custom_call.1} parent=5 // pred_region
      %s298 = ssub.s32 %s17, 1
      // Predicated region
      $region13: #{tpu_custom_call.1} parent=11 // pred_check
        %p299 = pneg %p90
      $region14: #{tpu_custom_call.1} parent=11 // pred_check_branch
        %301 = sbr.rel (%p299) target = $region16
      $region15: #{tpu_custom_call.1} parent=11 // pred_region
        _
      $region16: #{tpu_custom_call.1} parent=11 // pred_fallthru
        _
      // Predicated region
      $region17: #{tpu_custom_call.1} parent=11 // pred_check
        %p302 = pneg %p111
      $region18: #{tpu_custom_call.1} parent=11 // pred_check_branch
        %304 = sbr.rel (%p302) target = $region20
      $region19: #{tpu_custom_call.1} parent=11 // pred_region
        _
      $region20: #{tpu_custom_call.1} parent=11 // pred_fallthru
        _
      // Predicated region
      $region21: #{tpu_custom_call.1} parent=11 // pred_check
        %p305 = pneg %p132
      $region22: #{tpu_custom_call.1} parent=11 // pred_check_branch
        %307 = sbr.rel (%p305) target = $region24
      $region23: #{tpu_custom_call.1} parent=11 // pred_region
        _
      $region24: #{tpu_custom_call.1} parent=11 // pred_fallthru
        _
      // Predicated region
      $region25: #{tpu_custom_call.1} parent=11 // pred_check
        %p308 = pneg %p153
      $region26: #{tpu_custom_call.1} parent=11 // pred_check_branch
        %310 = sbr.rel (%p308) target = $region28
      $region27: #{tpu_custom_call.1} parent=11 // pred_region
        _
      $region28: #{tpu_custom_call.1} parent=11 // pred_fallthru
        _
      // Predicated region
      $region29: #{tpu_custom_call.1} parent=11 // pred_check
        %p311 = pneg %p174
      $region30: #{tpu_custom_call.1} parent=11 // pred_check_branch
        %313 = sbr.rel (%p311) target = $region32
      $region31: #{tpu_custom_call.1} parent=11 // pred_region
        _
      $region32: #{tpu_custom_call.1} parent=11 // pred_fallthru
        _
      // Predicated region
      $region33: #{tpu_custom_call.1} parent=11 // pred_check
        %p314 = pneg %p195
      $region34: #{tpu_custom_call.1} parent=11 // pred_check_branch
        %316 = sbr.rel (%p314) target = $region36
      $region35: #{tpu_custom_call.1} parent=11 // pred_region
        _
      $region36: #{tpu_custom_call.1} parent=11 // pred_fallthru
        _
      // Predicated region
      $region37: #{tpu_custom_call.1} parent=11 // pred_check
        %p317 = pneg %p216
      $region38: #{tpu_custom_call.1} parent=11 // pred_check_branch
        %319 = sbr.rel (%p317) target = $region40
      $region39: #{tpu_custom_call.1} parent=11 // pred_region
        _
      $region40: #{tpu_custom_call.1} parent=11 // pred_fallthru
        _
      // Predicated region
      $region41: #{tpu_custom_call.1} parent=11 // pred_check
        %p320 = pneg %p237
      $region42: #{tpu_custom_call.1} parent=11 // pred_check_branch
        %322 = sbr.rel (%p320) target = $region44
      $region43: #{tpu_custom_call.1} parent=11 // pred_region
        _
      $region44: #{tpu_custom_call.1} parent=11 // pred_fallthru
        _
      // Predicated region
      $region45: #{tpu_custom_call.1} parent=11 // pred_check
        %p323 = pneg %p258
      $region46: #{tpu_custom_call.1} parent=11 // pred_check_branch
        %325 = sbr.rel (%p323) target = $region48
      $region47: #{tpu_custom_call.1} parent=11 // pred_region
        _
      $region48: #{tpu_custom_call.1} parent=11 // pred_fallthru
        _
    $region12: #{tpu_custom_call.1} parent=5 // pred_fallthru
      _
    %p326 = scmp.lt.s32.totalorder %s17, 2
    // Predicated region
    $region49: #{tpu_custom_call.1} parent=5 // pred_check
      %p327 = pneg %p326
    $region50: #{tpu_custom_call.1} parent=5 // pred_check_branch
      %329 = sbr.rel (%p327) target = $region52
    $region51: #{tpu_custom_call.1} parent=5 // pred_region
      // Predicated region
      $region53: #{tpu_custom_call.1} parent=51 // pred_check
        %p330 = pneg %p37
      $region54: #{tpu_custom_call.1} parent=51 // pred_check_branch
        %332 = sbr.rel (%p330) target = $region56
      $region55: #{tpu_custom_call.1} parent=51 // pred_region
        %p333 = scmp.lt.s32.totalorder %s17, 1
        %s334 = scalar_select %p333, %s17, 1
        %s335 = smul.addr %s334, 8
        %s336 = scalar_lea.vmem %s0, %s335
      $region56: #{tpu_custom_call.1} parent=51 // pred_fallthru
        _
      // Predicated region
      $region57: #{tpu_custom_call.1} parent=51 // pred_check
        %p337 = pneg %p63
      $region58: #{tpu_custom_call.1} parent=51 // pred_check_branch
        %339 = sbr.rel (%p337) target = $region60
      $region59: #{tpu_custom_call.1} parent=51 // pred_region
        %p340 = scmp.lt.s32.totalorder %s17, 1
        %s341 = scalar_select %p340, %s17, 1
        %s342 = scalar_lea.vmem %s1, %s341
      $region60: #{tpu_custom_call.1} parent=51 // pred_fallthru
        _
    $region52: #{tpu_custom_call.1} parent=5 // pred_fallthru
      _
    %p343 = scmp.le.s32.totalorder 1, %s17
    %p344 = scmp.lt.s32.totalorder %s17, 3
    %p345 = pnand %p343, %p344
    %p346 = pneg %p345
    // Predicated region
    $region61: #{tpu_custom_call.1} parent=5 // pred_check
      _
    $region62: #{tpu_custom_call.1} parent=5 // pred_check_branch
      %348 = sbr.rel (%p345) target = $region64
    $region63: #{tpu_custom_call.1} parent=5 // pred_region
      %s349 = ssub.s32 %s17, 1
      %p350 = scmp.lt.s32.totalorder %s22, 1
      %s351 = scalar_select %p350, %s22, 1
      %s352 = smul.addr %s351, 8
      %s353 = scalar_lea.vmem %s0, %s352
      %p354 = pneg %p43
      %p355 = pneg %p40
      %p356 = scmp.lt.s32.totalorder %s22, 1
      %s357 = scalar_select %p356, %s22, 1
      %s358 = scalar_lea.vmem %s1, %s357
      %p359 = pneg %p69
      %p360 = pneg %p66
      %p361 = pneg %p90
      %p362 = pneg %p87
      %p363 = pneg %p111
      %p364 = pneg %p108
      %p365 = pneg %p132
      %p366 = pneg %p129
      %p367 = pneg %p153
      %p368 = pneg %p150
      %p369 = pneg %p174
      %p370 = pneg %p171
      %p371 = pneg %p195
      %p372 = pneg %p192
      %p373 = pneg %p216
      %p374 = pneg %p213
      %p375 = pneg %p237
      %p376 = pneg %p234
      %p377 = pneg %p258
      %p378 = pneg %p255
      %p379 = pneg %p284
      %p380 = pneg %p281
      %p381 = scmp.lt.s32.totalorder %s22, 1
      %s382 = scalar_select %p381, %s22, 1
      %s383 = smul.addr %s382, 8
      %s384 = scalar_lea.vmem %s11, %s383
      %p385 = scmp.lt.s32.totalorder %s22, 1
      %s386 = scalar_select %p385, %s22, 1
      %s387 = smul.addr %s386, 8
      %s388 = scalar_lea.vmem %s0, %s387
      %p389 = scmp.lt.s32.totalorder %s22, 1
      %s390 = scalar_select %p389, %s22, 1
      %s391 = scalar_lea.vmem %s1, %s390
      %p392 = scmp.lt.s32.totalorder %s22, 1
      %s393 = scalar_select %p392, %s22, 1
      %s394 = smul.addr %s393, 8
      %s395 = scalar_lea.vmem %s11, %s394
      %v396 = vld [vmem:[%s388] sm:$0xff]
      %v397 = vld [vmem:[%s391] sm:$0x1]
      %v399 = vperm.slane %v397, 0
      %v401 = vld [vmem:[%s4] sm:$0xff]
      %v402 = vld [vmem:[%s4 + $0x8] sm:$0xff]
      %v403 = vld [vmem:[%s4 + $0x10] sm:$0xff]
      %v404 = vld [vmem:[%s4 + $0x18] sm:$0xff]
      %v405 = vld [vmem:[%s8] sm:$0x3f]
      %v406 = vld [vmem:[%s2] sm:$0xff]
      %v407 = vld [vmem:[%s2 + $0x8] sm:$0xff]
      %v408 = vld [vmem:[%s2 + $0x10] sm:$0xff]
      %v409 = vld [vmem:[%s2 + $0x18] sm:$0xff]
      %v410 = vld [vmem:[%s2 + $0x20] sm:$0xff]
      %v411 = vld [vmem:[%s2 + $0x28] sm:$0xff]
      %v412 = vld [vmem:[%s2 + $0x30] sm:$0xff]
      %v413 = vld [vmem:[%s2 + $0x38] sm:$0xff]
      %v414 = vld [vmem:[%s2 + $0x40] sm:$0xff]
      %v415 = vld [vmem:[%s2 + $0x48] sm:$0xff]
      %v416 = vld [vmem:[%s2 + $0x50] sm:$0xff]
      %v417 = vld [vmem:[%s2 + $0x58] sm:$0xff]
      %v418 = vld [vmem:[%s2 + $0x60] sm:$0xff]
      %v419 = vld [vmem:[%s2 + $0x68] sm:$0xff]
      %v420 = vld [vmem:[%s2 + $0x70] sm:$0xff]
      %v421 = vld [vmem:[%s2 + $0x78] sm:$0xff]
      %v422 = vld [vmem:[%s3] sm:$0x1]
      %v423 = vld [vmem:[%s3 + $0x1] sm:$0x1]
      %v424 = vld [vmem:[%s3 + $0x2] sm:$0x1]
      %v425 = vld [vmem:[%s3 + $0x3] sm:$0x1]
      %v430 = vperm.slane %v422, 0
      %v431 = vperm.slane %v423, 0
      %v432 = vperm.slane %v424, 0
      %v433 = vperm.slane %v425, 0
      %vm438 = vcmask 261120
      %v440 = vsel %vm438, %v396, 0
      %442 = vmatpush.msra.mxu0 0.0
      %443 = vmatpush.msra.mxu0 0.0
      %444 = vmatpush.msra.mxu0 0.0
      %445 = vmatpush.msra.mxu0 0.0
      %446 = vmatpush.msra.mxu0 0.0
      %447 = vmatpush.msra.mxu0 0.0
      %448 = vmatpush.msra.mxu0 0.0
      %449 = vmatpush.msra.mxu0 0.0
      %450 = vmatpush.msra.mxu0 0.0
      %451 = vmatpush.msra.mxu0 0.0
      %452 = vmatpush.msra.mxu0 0.0
      %453 = vmatpush.msra.mxu0 0.0
      %454 = vmatpush.msra.mxu0 %v409
      %455 = vmatpush.msra.mxu0 %v408
      %456 = vmatpush.msra.mxu0 %v407
      %457 = vmatpush.msra.mxu0 %v406
      %458 = vmatmul.f32.gmra.mxu0 %v440
      %v459 = vpop.f32.mrf.mxu0
      %v460 = vadd.f32 %v430, %v459
      %461 = vdwg.mxu0
      %462 = vmatpush.msra.mxu0 0.0
      %463 = vmatpush.msra.mxu0 0.0
      %464 = vmatpush.msra.mxu0 0.0
      %465 = vmatpush.msra.mxu0 0.0
      %466 = vmatpush.msra.mxu0 0.0
      %467 = vmatpush.msra.mxu0 0.0
      %468 = vmatpush.msra.mxu0 0.0
      %469 = vmatpush.msra.mxu0 0.0
      %470 = vmatpush.msra.mxu0 0.0
      %471 = vmatpush.msra.mxu0 0.0
      %472 = vmatpush.msra.mxu0 0.0
      %473 = vmatpush.msra.mxu0 0.0
      %474 = vmatpush.msra.mxu0 %v413
      %475 = vmatpush.msra.mxu0 %v412
      %476 = vmatpush.msra.mxu0 %v411
      %477 = vmatpush.msra.mxu0 %v410
      %478 = vmatmul.f32.gmra.mxu0 %v440
      %v479 = vpop.f32.mrf.mxu0
      %v480 = vadd.f32 %v431, %v479
      %481 = vdwg.mxu0
      %482 = vmatpush.msra.mxu0 0.0
      %483 = vmatpush.msra.mxu0 0.0
      %484 = vmatpush.msra.mxu0 0.0
      %485 = vmatpush.msra.mxu0 0.0
      %486 = vmatpush.msra.mxu0 0.0
      %487 = vmatpush.msra.mxu0 0.0
      %488 = vmatpush.msra.mxu0 0.0
      %489 = vmatpush.msra.mxu0 0.0
      %490 = vmatpush.msra.mxu0 0.0
      %491 = vmatpush.msra.mxu0 0.0
      %492 = vmatpush.msra.mxu0 0.0
      %493 = vmatpush.msra.mxu0 0.0
      %494 = vmatpush.msra.mxu0 %v417
      %495 = vmatpush.msra.mxu0 %v416
      %496 = vmatpush.msra.mxu0 %v415
      %497 = vmatpush.msra.mxu0 %v414
      %498 = vmatmul.f32.gmra.mxu0 %v440
      %v499 = vpop.f32.mrf.mxu0
      %v500 = vadd.f32 %v432, %v499
      %501 = vdwg.mxu0
      %502 = vmatpush.msra.mxu0 0.0
      %503 = vmatpush.msra.mxu0 0.0
      %504 = vmatpush.msra.mxu0 0.0
      %505 = vmatpush.msra.mxu0 0.0
      %506 = vmatpush.msra.mxu0 0.0
      %507 = vmatpush.msra.mxu0 0.0
      %508 = vmatpush.msra.mxu0 0.0
      %509 = vmatpush.msra.mxu0 0.0
      %510 = vmatpush.msra.mxu0 0.0
      %511 = vmatpush.msra.mxu0 0.0
      %512 = vmatpush.msra.mxu0 0.0
      %513 = vmatpush.msra.mxu0 0.0
      %514 = vmatpush.msra.mxu0 %v421
      %515 = vmatpush.msra.mxu0 %v420
      %516 = vmatpush.msra.mxu0 %v419
      %517 = vmatpush.msra.mxu0 %v418
      %518 = vmatmul.f32.gmra.mxu0 %v440
      %v519 = vpop.f32.mrf.mxu0
      %v520 = vadd.f32 %v433, %v519
      %521 = vdwg.mxu0
      %s522 = scalar_lea.vmem %s2, 128
      %v523 = vld [vmem:[%s522] sm:$0xff]
      %v524 = vld [vmem:[%s522 + $0x8] sm:$0xff]
      %v525 = vld [vmem:[%s522 + $0x10] sm:$0xff]
      %v526 = vld [vmem:[%s522 + $0x18] sm:$0xff]
      %v527 = vld [vmem:[%s522 + $0x20] sm:$0xff]
      %v528 = vld [vmem:[%s522 + $0x28] sm:$0xff]
      %v529 = vld [vmem:[%s522 + $0x30] sm:$0xff]
      %v530 = vld [vmem:[%s522 + $0x38] sm:$0xff]
      %v531 = vld [vmem:[%s522 + $0x40] sm:$0xff]
      %v532 = vld [vmem:[%s522 + $0x48] sm:$0xff]
      %v533 = vld [vmem:[%s522 + $0x50] sm:$0xff]
      %v534 = vld [vmem:[%s522 + $0x58] sm:$0xff]
      %v535 = vld [vmem:[%s522 + $0x60] sm:$0xff]
      %v536 = vld [vmem:[%s522 + $0x68] sm:$0xff]
      %v537 = vld [vmem:[%s522 + $0x70] sm:$0xff]
      %v538 = vld [vmem:[%s522 + $0x78] sm:$0xff]
      %s539 = scalar_lea.vmem %s3, 4
      %v540 = vld [vmem:[%s539] sm:$0x1]
      %v541 = vld [vmem:[%s539 + $0x1] sm:$0x1]
      %v542 = vld [vmem:[%s539 + $0x2] sm:$0x1]
      %v543 = vld [vmem:[%s539 + $0x3] sm:$0x1]
      %v548 = vperm.slane %v540, 0
      %v549 = vperm.slane %v541, 0
      %v550 = vperm.slane %v542, 0
      %v551 = vperm.slane %v543, 0
      %556 = vmatpush.msra.mxu0 0.0
      %557 = vmatpush.msra.mxu0 0.0
      %558 = vmatpush.msra.mxu0 0.0
      %559 = vmatpush.msra.mxu0 0.0
      %560 = vmatpush.msra.mxu0 0.0
      %561 = vmatpush.msra.mxu0 0.0
      %562 = vmatpush.msra.mxu0 0.0
      %563 = vmatpush.msra.mxu0 0.0
      %564 = vmatpush.msra.mxu0 0.0
      %565 = vmatpush.msra.mxu0 0.0
      %566 = vmatpush.msra.mxu0 0.0
      %567 = vmatpush.msra.mxu0 0.0
      %568 = vmatpush.msra.mxu0 %v526
      %569 = vmatpush.msra.mxu0 %v525
      %570 = vmatpush.msra.mxu0 %v524
      %571 = vmatpush.msra.mxu0 %v523
      %572 = vmatmul.f32.gmra.mxu0 %v440
      %v573 = vpop.f32.mrf.mxu0
      %v574 = vadd.f32 %v548, %v573
      %575 = vdwg.mxu0
      %576 = vmatpush.msra.mxu0 0.0
      %577 = vmatpush.msra.mxu0 0.0
      %578 = vmatpush.msra.mxu0 0.0
      %579 = vmatpush.msra.mxu0 0.0
      %580 = vmatpush.msra.mxu0 0.0
      %581 = vmatpush.msra.mxu0 0.0
      %582 = vmatpush.msra.mxu0 0.0
      %583 = vmatpush.msra.mxu0 0.0
      %584 = vmatpush.msra.mxu0 0.0
      %585 = vmatpush.msra.mxu0 0.0
      %586 = vmatpush.msra.mxu0 0.0
      %587 = vmatpush.msra.mxu0 0.0
      %588 = vmatpush.msra.mxu0 %v530
      %589 = vmatpush.msra.mxu0 %v529
      %590 = vmatpush.msra.mxu0 %v528
      %591 = vmatpush.msra.mxu0 %v527
      %592 = vmatmul.f32.gmra.mxu0 %v440
      %v593 = vpop.f32.mrf.mxu0
      %v594 = vadd.f32 %v549, %v593
      %595 = vdwg.mxu0
      %596 = vmatpush.msra.mxu0 0.0
      %597 = vmatpush.msra.mxu0 0.0
      %598 = vmatpush.msra.mxu0 0.0
      %599 = vmatpush.msra.mxu0 0.0
      %600 = vmatpush.msra.mxu0 0.0
      %601 = vmatpush.msra.mxu0 0.0
      %602 = vmatpush.msra.mxu0 0.0
      %603 = vmatpush.msra.mxu0 0.0
      %604 = vmatpush.msra.mxu0 0.0
      %605 = vmatpush.msra.mxu0 0.0
      %606 = vmatpush.msra.mxu0 0.0
      %607 = vmatpush.msra.mxu0 0.0
      %608 = vmatpush.msra.mxu0 %v534
      %609 = vmatpush.msra.mxu0 %v533
      %610 = vmatpush.msra.mxu0 %v532
      %611 = vmatpush.msra.mxu0 %v531
      %612 = vmatmul.f32.gmra.mxu0 %v440
      %v613 = vpop.f32.mrf.mxu0
      %v614 = vadd.f32 %v550, %v613
      %615 = vdwg.mxu0
      %616 = vmatpush.msra.mxu0 0.0
      %617 = vmatpush.msra.mxu0 0.0
      %618 = vmatpush.msra.mxu0 0.0
      %619 = vmatpush.msra.mxu0 0.0
      %620 = vmatpush.msra.mxu0 0.0
      %621 = vmatpush.msra.mxu0 0.0
      %622 = vmatpush.msra.mxu0 0.0
      %623 = vmatpush.msra.mxu0 0.0
      %624 = vmatpush.msra.mxu0 0.0
      %625 = vmatpush.msra.mxu0 0.0
      %626 = vmatpush.msra.mxu0 0.0
      %627 = vmatpush.msra.mxu0 0.0
      %628 = vmatpush.msra.mxu0 %v538
      %629 = vmatpush.msra.mxu0 %v537
      %630 = vmatpush.msra.mxu0 %v536
      %631 = vmatpush.msra.mxu0 %v535
      %632 = vmatmul.f32.gmra.mxu0 %v440
      %v633 = vpop.f32.mrf.mxu0
      %v634 = vadd.f32 %v551, %v633
      %635 = vdwg.mxu0
      %s636 = scalar_lea.vmem %s2, 256
      %v637 = vld [vmem:[%s636] sm:$0xff]
      %v638 = vld [vmem:[%s636 + $0x8] sm:$0xff]
      %v639 = vld [vmem:[%s636 + $0x10] sm:$0xff]
      %v640 = vld [vmem:[%s636 + $0x18] sm:$0xff]
      %v641 = vld [vmem:[%s636 + $0x20] sm:$0xff]
      %v642 = vld [vmem:[%s636 + $0x28] sm:$0xff]
      %v643 = vld [vmem:[%s636 + $0x30] sm:$0xff]
      %v644 = vld [vmem:[%s636 + $0x38] sm:$0xff]
      %v645 = vld [vmem:[%s636 + $0x40] sm:$0xff]
      %v646 = vld [vmem:[%s636 + $0x48] sm:$0xff]
      %v647 = vld [vmem:[%s636 + $0x50] sm:$0xff]
      %v648 = vld [vmem:[%s636 + $0x58] sm:$0xff]
      %v649 = vld [vmem:[%s636 + $0x60] sm:$0xff]
      %v650 = vld [vmem:[%s636 + $0x68] sm:$0xff]
      %v651 = vld [vmem:[%s636 + $0x70] sm:$0xff]
      %v652 = vld [vmem:[%s636 + $0x78] sm:$0xff]
      %s653 = scalar_lea.vmem %s3, 8
      %v654 = vld [vmem:[%s653] sm:$0x1]
      %v655 = vld [vmem:[%s653 + $0x1] sm:$0x1]
      %v656 = vld [vmem:[%s653 + $0x2] sm:$0x1]
      %v657 = vld [vmem:[%s653 + $0x3] sm:$0x1]
      %v662 = vperm.slane %v654, 0
      %v663 = vperm.slane %v655, 0
      %v664 = vperm.slane %v656, 0
      %v665 = vperm.slane %v657, 0
      %670 = vmatpush.msra.mxu0 0.0
      %671 = vmatpush.msra.mxu0 0.0
      %672 = vmatpush.msra.mxu0 0.0
      %673 = vmatpush.msra.mxu0 0.0
      %674 = vmatpush.msra.mxu0 0.0
      %675 = vmatpush.msra.mxu0 0.0
      %676 = vmatpush.msra.mxu0 0.0
      %677 = vmatpush.msra.mxu0 0.0
      %678 = vmatpush.msra.mxu0 0.0
      %679 = vmatpush.msra.mxu0 0.0
      %680 = vmatpush.msra.mxu0 0.0
      %681 = vmatpush.msra.mxu0 0.0
      %682 = vmatpush.msra.mxu0 %v640
      %683 = vmatpush.msra.mxu0 %v639
      %684 = vmatpush.msra.mxu0 %v638
      %685 = vmatpush.msra.mxu0 %v637
      %686 = vmatmul.f32.gmra.mxu0 %v440
      %v687 = vpop.f32.mrf.mxu0
      %v688 = vadd.f32 %v662, %v687
      %689 = vdwg.mxu0
      %690 = vmatpush.msra.mxu0 0.0
      %691 = vmatpush.msra.mxu0 0.0
      %692 = vmatpush.msra.mxu0 0.0
      %693 = vmatpush.msra.mxu0 0.0
      %694 = vmatpush.msra.mxu0 0.0
      %695 = vmatpush.msra.mxu0 0.0
      %696 = vmatpush.msra.mxu0 0.0
      %697 = vmatpush.msra.mxu0 0.0
      %698 = vmatpush.msra.mxu0 0.0
      %699 = vmatpush.msra.mxu0 0.0
      %700 = vmatpush.msra.mxu0 0.0
      %701 = vmatpush.msra.mxu0 0.0
      %702 = vmatpush.msra.mxu0 %v644
      %703 = vmatpush.msra.mxu0 %v643
      %704 = vmatpush.msra.mxu0 %v642
      %705 = vmatpush.msra.mxu0 %v641
      %706 = vmatmul.f32.gmra.mxu0 %v440
      %v707 = vpop.f32.mrf.mxu0
      %v708 = vadd.f32 %v663, %v707
      %709 = vdwg.mxu0
      %710 = vmatpush.msra.mxu0 0.0
      %711 = vmatpush.msra.mxu0 0.0
      %712 = vmatpush.msra.mxu0 0.0
      %713 = vmatpush.msra.mxu0 0.0
      %714 = vmatpush.msra.mxu0 0.0
      %715 = vmatpush.msra.mxu0 0.0
      %716 = vmatpush.msra.mxu0 0.0
      %717 = vmatpush.msra.mxu0 0.0
      %718 = vmatpush.msra.mxu0 0.0
      %719 = vmatpush.msra.mxu0 0.0
      %720 = vmatpush.msra.mxu0 0.0
      %721 = vmatpush.msra.mxu0 0.0
      %722 = vmatpush.msra.mxu0 %v648
      %723 = vmatpush.msra.mxu0 %v647
      %724 = vmatpush.msra.mxu0 %v646
      %725 = vmatpush.msra.mxu0 %v645
      %726 = vmatmul.f32.gmra.mxu0 %v440
      %v727 = vpop.f32.mrf.mxu0
      %v728 = vadd.f32 %v664, %v727
      %729 = vdwg.mxu0
      %730 = vmatpush.msra.mxu0 0.0
      %731 = vmatpush.msra.mxu0 0.0
      %732 = vmatpush.msra.mxu0 0.0
      %733 = vmatpush.msra.mxu0 0.0
      %734 = vmatpush.msra.mxu0 0.0
      %735 = vmatpush.msra.mxu0 0.0
      %736 = vmatpush.msra.mxu0 0.0
      %737 = vmatpush.msra.mxu0 0.0
      %738 = vmatpush.msra.mxu0 0.0
      %739 = vmatpush.msra.mxu0 0.0
      %740 = vmatpush.msra.mxu0 0.0
      %741 = vmatpush.msra.mxu0 0.0
      %742 = vmatpush.msra.mxu0 %v652
      %743 = vmatpush.msra.mxu0 %v651
      %744 = vmatpush.msra.mxu0 %v650
      %745 = vmatpush.msra.mxu0 %v649
      %746 = vmatmul.f32.gmra.mxu0 %v440
      %v747 = vpop.f32.mrf.mxu0
      %v748 = vadd.f32 %v665, %v747
      %749 = vdwg.mxu0
      %vm750 = vcmask 64512
      %v752 = vsel %vm750, %v460, 0
      %v755 = vsel %vm750, %v574, 0
      %757 = vmatpush.xpose.msra.mxu0 0.0
      %758 = vmatpush.xpose.msra.mxu0 0.0
      %759 = vmatpush.xpose.msra.mxu0 0.0
      %760 = vmatpush.xpose.msra.mxu0 0.0
      %761 = vmatpush.xpose.msra.mxu0 0.0
      %762 = vmatpush.xpose.msra.mxu0 0.0
      %763 = vmatpush.xpose.msra.mxu0 0.0
      %764 = vmatpush.xpose.msra.mxu0 0.0
      %765 = vmatpush.xpose.msra.mxu0 0.0
      %766 = vmatpush.xpose.msra.mxu0 0.0
      %767 = vmatpush.xpose.msra.mxu0 0.0
      %768 = vmatpush.xpose.msra.mxu0 0.0
      %769 = vmatpush.xpose.msra.mxu0 0.0
      %770 = vmatpush.xpose.msra.mxu0 0.0
      %771 = vmatpush.xpose.msra.mxu0 0.0
      %772 = vmatpush.xpose.msra.mxu0 %v755
      %773 = vmatmul.f32.gmra.mxu0 %v752
      %v774 = vpop.f32.mrf.mxu0
      %v775 = vadd.f32 0.0, %v774
      %776 = vdwg.mxu0
      %v778 = vsel %vm750, %v480, 0
      %v781 = vsel %vm750, %v594, 0
      %783 = vmatpush.xpose.msra.mxu0 0.0
      %784 = vmatpush.xpose.msra.mxu0 0.0
      %785 = vmatpush.xpose.msra.mxu0 0.0
      %786 = vmatpush.xpose.msra.mxu0 0.0
      %787 = vmatpush.xpose.msra.mxu0 0.0
      %788 = vmatpush.xpose.msra.mxu0 0.0
      %789 = vmatpush.xpose.msra.mxu0 0.0
      %790 = vmatpush.xpose.msra.mxu0 0.0
      %791 = vmatpush.xpose.msra.mxu0 0.0
      %792 = vmatpush.xpose.msra.mxu0 0.0
      %793 = vmatpush.xpose.msra.mxu0 0.0
      %794 = vmatpush.xpose.msra.mxu0 0.0
      %795 = vmatpush.xpose.msra.mxu0 0.0
      %796 = vmatpush.xpose.msra.mxu0 0.0
      %797 = vmatpush.xpose.msra.mxu0 0.0
      %798 = vmatpush.xpose.msra.mxu0 %v781
      %799 = vmatmul.f32.gmra.mxu0 %v778
      %v800 = vpop.f32.mrf.mxu0
      %v801 = vadd.f32 0.0, %v800
      %802 = vdwg.mxu0
      %v804 = vsel %vm750, %v500, 0
      %v807 = vsel %vm750, %v614, 0
      %809 = vmatpush.xpose.msra.mxu0 0.0
      %810 = vmatpush.xpose.msra.mxu0 0.0
      %811 = vmatpush.xpose.msra.mxu0 0.0
      %812 = vmatpush.xpose.msra.mxu0 0.0
      %813 = vmatpush.xpose.msra.mxu0 0.0
      %814 = vmatpush.xpose.msra.mxu0 0.0
      %815 = vmatpush.xpose.msra.mxu0 0.0
      %816 = vmatpush.xpose.msra.mxu0 0.0
      %817 = vmatpush.xpose.msra.mxu0 0.0
      %818 = vmatpush.xpose.msra.mxu0 0.0
      %819 = vmatpush.xpose.msra.mxu0 0.0
      %820 = vmatpush.xpose.msra.mxu0 0.0
      %821 = vmatpush.xpose.msra.mxu0 0.0
      %822 = vmatpush.xpose.msra.mxu0 0.0
      %823 = vmatpush.xpose.msra.mxu0 0.0
      %824 = vmatpush.xpose.msra.mxu0 %v807
      %825 = vmatmul.f32.gmra.mxu0 %v804
      %v826 = vpop.f32.mrf.mxu0
      %v827 = vadd.f32 0.0, %v826
      %828 = vdwg.mxu0
      %v830 = vsel %vm750, %v520, 0
      %v833 = vsel %vm750, %v634, 0
      %835 = vmatpush.xpose.msra.mxu0 0.0
      %836 = vmatpush.xpose.msra.mxu0 0.0
      %837 = vmatpush.xpose.msra.mxu0 0.0
      %838 = vmatpush.xpose.msra.mxu0 0.0
      %839 = vmatpush.xpose.msra.mxu0 0.0
      %840 = vmatpush.xpose.msra.mxu0 0.0
      %841 = vmatpush.xpose.msra.mxu0 0.0
      %842 = vmatpush.xpose.msra.mxu0 0.0
      %843 = vmatpush.xpose.msra.mxu0 0.0
      %844 = vmatpush.xpose.msra.mxu0 0.0
      %845 = vmatpush.xpose.msra.mxu0 0.0
      %846 = vmatpush.xpose.msra.mxu0 0.0
      %847 = vmatpush.xpose.msra.mxu0 0.0
      %848 = vmatpush.xpose.msra.mxu0 0.0
      %849 = vmatpush.xpose.msra.mxu0 0.0
      %850 = vmatpush.xpose.msra.mxu0 %v833
      %851 = vmatmul.f32.gmra.mxu0 %v830
      %v852 = vpop.f32.mrf.mxu0
      %v853 = vadd.f32 0.0, %v852
      %854 = vdwg.mxu0
      %v855 = vmul.f32 %v775, 0.35355338
      %v856 = vmul.f32 %v801, 0.35355338
      %v857 = vmul.f32 %v827, 0.35355338
      %v858 = vmul.f32 %v853, 0.35355338
      %v859 = vadd.f32 %v855, %v399
      %v860 = vadd.f32 %v856, %v399
      %v861 = vadd.f32 %v857, %v399
      %v862 = vadd.f32 %v858, %v399
      %v863 = vsel %vm750, %v859, -inf
      %864 = vmax.xlane.f32.xlu0 %v863
      %v865 = vpop.xlane.xlu0 %864
      %v866 = vsel %vm750, %v860, -inf
      %867 = vmax.xlane.f32.xlu0 %v866
      %v868 = vpop.xlane.xlu0 %867
      %v869 = vsel %vm750, %v861, -inf
      %870 = vmax.xlane.f32.xlu0 %v869
      %v871 = vpop.xlane.xlu0 %870
      %v872 = vsel %vm750, %v862, -inf
      %873 = vmax.xlane.f32.xlu0 %v872
      %v874 = vpop.xlane.xlu0 %873
      %v875 = vsub.f32 %v859, %v865
      %v876 = vsub.f32 %v860, %v868
      %v877 = vsub.f32 %v861, %v871
      %v878 = vsub.f32 %v862, %v874
      %v879 = vmul.f32 %v875, 1.442695
      %v880 = vpow.pop %v879
      %v881 = vmul.f32 %v876, 1.442695
      %v882 = vpow.pop %v881
      %v883 = vmul.f32 %v877, 1.442695
      %v884 = vpow.pop %v883
      %v885 = vmul.f32 %v878, 1.442695
      %v886 = vpow.pop %v885
      %v887 = vsel %vm750, %v880, 0.0
      %888 = vadd.xlane.f32.xlu0 %v887
      %v889 = vpop.xlane.xlu0 %888
      %v890 = vsel %vm750, %v882, 0.0
      %891 = vadd.xlane.f32.xlu0 %v890
      %v892 = vpop.xlane.xlu0 %891
      %v893 = vsel %vm750, %v884, 0.0
      %894 = vadd.xlane.f32.xlu0 %v893
      %v895 = vpop.xlane.xlu0 %894
      %v896 = vsel %vm750, %v886, 0.0
      %897 = vadd.xlane.f32.xlu0 %v896
      %v898 = vpop.xlane.xlu0 %897
      %v899 = vrcp.pop %v889
      %v900 = vrcp.pop %v892
      %v901 = vrcp.pop %v895
      %v902 = vrcp.pop %v898
      %v903 = vmul.f32 %v880, %v899
      %v904 = vmul.f32 %v882, %v900
      %v905 = vmul.f32 %v884, %v901
      %v906 = vmul.f32 %v886, %v902
      %v908 = vsel %vm750, %v903, 0
      %910 = vmatpush.msra.mxu0 0.0
      %911 = vmatpush.msra.mxu0 0.0
      %912 = vmatpush.msra.mxu0 0.0
      %913 = vmatpush.msra.mxu0 0.0
      %914 = vmatpush.msra.mxu0 0.0
      %915 = vmatpush.msra.mxu0 0.0
      %916 = vmatpush.msra.mxu0 0.0
      %917 = vmatpush.msra.mxu0 0.0
      %918 = vmatpush.msra.mxu0 0.0
      %919 = vmatpush.msra.mxu0 0.0
      %920 = vmatpush.msra.mxu0 0.0
      %921 = vmatpush.msra.mxu0 0.0
      %922 = vmatpush.msra.mxu0 0.0
      %923 = vmatpush.msra.mxu0 0.0
      %924 = vmatpush.msra.mxu0 0.0
      %925 = vmatpush.msra.mxu0 %v688
      %926 = vmatmul.f32.gmra.mxu0 %v908
      %v927 = vpop.f32.mrf.mxu0
      %v928 = vadd.f32 0.0, %v927
      %929 = vdwg.mxu0
      %v931 = vsel %vm750, %v904, 0
      %933 = vmatpush.msra.mxu0 0.0
      %934 = vmatpush.msra.mxu0 0.0
      %935 = vmatpush.msra.mxu0 0.0
      %936 = vmatpush.msra.mxu0 0.0
      %937 = vmatpush.msra.mxu0 0.0
      %938 = vmatpush.msra.mxu0 0.0
      %939 = vmatpush.msra.mxu0 0.0
      %940 = vmatpush.msra.mxu0 0.0
      %941 = vmatpush.msra.mxu0 0.0
      %942 = vmatpush.msra.mxu0 0.0
      %943 = vmatpush.msra.mxu0 0.0
      %944 = vmatpush.msra.mxu0 0.0
      %945 = vmatpush.msra.mxu0 0.0
      %946 = vmatpush.msra.mxu0 0.0
      %947 = vmatpush.msra.mxu0 0.0
      %948 = vmatpush.msra.mxu0 %v708
      %949 = vmatmul.f32.gmra.mxu0 %v931
      %v950 = vpop.f32.mrf.mxu0
      %v951 = vadd.f32 0.0, %v950
      %952 = vdwg.mxu0
      %v954 = vsel %vm750, %v905, 0
      %956 = vmatpush.msra.mxu0 0.0
      %957 = vmatpush.msra.mxu0 0.0
      %958 = vmatpush.msra.mxu0 0.0
      %959 = vmatpush.msra.mxu0 0.0
      %960 = vmatpush.msra.mxu0 0.0
      %961 = vmatpush.msra.mxu0 0.0
      %962 = vmatpush.msra.mxu0 0.0
      %963 = vmatpush.msra.mxu0 0.0
      %964 = vmatpush.msra.mxu0 0.0
      %965 = vmatpush.msra.mxu0 0.0
      %966 = vmatpush.msra.mxu0 0.0
      %967 = vmatpush.msra.mxu0 0.0
      %968 = vmatpush.msra.mxu0 0.0
      %969 = vmatpush.msra.mxu0 0.0
      %970 = vmatpush.msra.mxu0 0.0
      %971 = vmatpush.msra.mxu0 %v728
      %972 = vmatmul.f32.gmra.mxu0 %v954
      %v973 = vpop.f32.mrf.mxu0
      %v974 = vadd.f32 0.0, %v973
      %975 = vdwg.mxu0
      %v977 = vsel %vm750, %v906, 0
      %979 = vmatpush.msra.mxu0 0.0
      %980 = vmatpush.msra.mxu0 0.0
      %981 = vmatpush.msra.mxu0 0.0
      %982 = vmatpush.msra.mxu0 0.0
      %983 = vmatpush.msra.mxu0 0.0
      %984 = vmatpush.msra.mxu0 0.0
      %985 = vmatpush.msra.mxu0 0.0
      %986 = vmatpush.msra.mxu0 0.0
      %987 = vmatpush.msra.mxu0 0.0
      %988 = vmatpush.msra.mxu0 0.0
      %989 = vmatpush.msra.mxu0 0.0
      %990 = vmatpush.msra.mxu0 0.0
      %991 = vmatpush.msra.mxu0 0.0
      %992 = vmatpush.msra.mxu0 0.0
      %993 = vmatpush.msra.mxu0 0.0
      %994 = vmatpush.msra.mxu0 %v748
      %995 = vmatmul.f32.gmra.mxu0 %v977
      %v996 = vpop.f32.mrf.mxu0
      %v997 = vadd.f32 0.0, %v996
      %998 = vdwg.mxu0
      %v1000 = vsel %vm750, %v928, 0
      %1002 = vmatpush.msra.mxu0 0.0
      %1003 = vmatpush.msra.mxu0 0.0
      %1004 = vmatpush.msra.mxu0 0.0
      %1005 = vmatpush.msra.mxu0 0.0
      %1006 = vmatpush.msra.mxu0 0.0
      %1007 = vmatpush.msra.mxu0 0.0
      %1008 = vmatpush.msra.mxu0 0.0
      %1009 = vmatpush.msra.mxu0 0.0
      %1010 = vmatpush.msra.mxu0 0.0
      %1011 = vmatpush.msra.mxu0 0.0
      %1012 = vmatpush.msra.mxu0 0.0
      %1013 = vmatpush.msra.mxu0 0.0
      %1014 = vmatpush.msra.mxu0 0.0
      %1015 = vmatpush.msra.mxu0 0.0
      %1016 = vmatpush.msra.mxu0 0.0
      %1017 = vmatpush.msra.mxu0 %v401
      %1018 = vmatmul.f32.gmra.mxu0 %v1000
      %v1019 = vpop.f32.mrf.mxu0
      %v1020 = vadd.f32 0.0, %v1019
      %1021 = vdwg.mxu0
      %v1023 = vsel %vm750, %v951, 0
      %1025 = vmatpush.msra.mxu0 0.0
      %1026 = vmatpush.msra.mxu0 0.0
      %1027 = vmatpush.msra.mxu0 0.0
      %1028 = vmatpush.msra.mxu0 0.0
      %1029 = vmatpush.msra.mxu0 0.0
      %1030 = vmatpush.msra.mxu0 0.0
      %1031 = vmatpush.msra.mxu0 0.0
      %1032 = vmatpush.msra.mxu0 0.0
      %1033 = vmatpush.msra.mxu0 0.0
      %1034 = vmatpush.msra.mxu0 0.0
      %1035 = vmatpush.msra.mxu0 0.0
      %1036 = vmatpush.msra.mxu0 0.0
      %1037 = vmatpush.msra.mxu0 0.0
      %1038 = vmatpush.msra.mxu0 0.0
      %1039 = vmatpush.msra.mxu0 0.0
      %1040 = vmatpush.msra.mxu0 %v402
      %1041 = vmatmul.f32.gmra.mxu0 %v1023
      %v1042 = vpop.f32.mrf.mxu0
      %v1043 = vadd.f32 0.0, %v1042
      %1044 = vdwg.mxu0
      %v1046 = vsel %vm750, %v974, 0
      %1048 = vmatpush.msra.mxu0 0.0
      %1049 = vmatpush.msra.mxu0 0.0
      %1050 = vmatpush.msra.mxu0 0.0
      %1051 = vmatpush.msra.mxu0 0.0
      %1052 = vmatpush.msra.mxu0 0.0
      %1053 = vmatpush.msra.mxu0 0.0
      %1054 = vmatpush.msra.mxu0 0.0
      %1055 = vmatpush.msra.mxu0 0.0
      %1056 = vmatpush.msra.mxu0 0.0
      %1057 = vmatpush.msra.mxu0 0.0
      %1058 = vmatpush.msra.mxu0 0.0
      %1059 = vmatpush.msra.mxu0 0.0
      %1060 = vmatpush.msra.mxu0 0.0
      %1061 = vmatpush.msra.mxu0 0.0
      %1062 = vmatpush.msra.mxu0 0.0
      %1063 = vmatpush.msra.mxu0 %v403
      %1064 = vmatmul.f32.gmra.mxu0 %v1046
      %v1065 = vpop.f32.mrf.mxu0
      %v1066 = vadd.f32 0.0, %v1065
      %1067 = vdwg.mxu0
      %v1069 = vsel %vm750, %v997, 0
      %1071 = vmatpush.msra.mxu0 0.0
      %1072 = vmatpush.msra.mxu0 0.0
      %1073 = vmatpush.msra.mxu0 0.0
      %1074 = vmatpush.msra.mxu0 0.0
      %1075 = vmatpush.msra.mxu0 0.0
      %1076 = vmatpush.msra.mxu0 0.0
      %1077 = vmatpush.msra.mxu0 0.0
      %1078 = vmatpush.msra.mxu0 0.0
      %1079 = vmatpush.msra.mxu0 0.0
      %1080 = vmatpush.msra.mxu0 0.0
      %1081 = vmatpush.msra.mxu0 0.0
      %1082 = vmatpush.msra.mxu0 0.0
      %1083 = vmatpush.msra.mxu0 0.0
      %1084 = vmatpush.msra.mxu0 0.0
      %1085 = vmatpush.msra.mxu0 0.0
      %1086 = vmatpush.msra.mxu0 %v404
      %1087 = vmatmul.f32.gmra.mxu0 %v1069
      %v1088 = vpop.f32.mrf.mxu0
      %v1089 = vadd.f32 0.0, %v1088
      %1090 = vdwg.mxu0
      %v1091 = vsel %vm438, %v1020, 0.0
      %v1092 = vsel %vm438, %v1043, 0.0
      %v1093 = vadd.f32 %v1091, %v1092
      %v1094 = vsel %vm438, %v1066, 0.0
      %v1095 = vadd.f32 %v1093, %v1094
      %v1096 = vsel %vm438, %v1089, 0.0
      %v1097 = vadd.f32 %v1095, %v1096
      %v1098 = vperm.slane %v405, 0
      %v1099 = vadd.f32 %v1097, %v1098
      %v1100 = vadd.f32 %v396, %v1099
      %v1101 = vsel %vm438, %v1100, 0.0
      %1102 = vadd.xlane.f32.xlu0 %v1101
      %v1103 = vpop.xlane.xlu0 %1102
      %v1104 = vrcp.pop 32.0
      %v1105 = vmul.f32 32.0, %v1104
      %v1106 = vsub.f32 1.0, %v1105
      %v1107 = vmul.f32 %v1104, %v1106
      %v1108 = vadd.f32 %v1104, %v1107
      %vm1109 = vweird.f32 %v1104
      %v1110 = vsel %vm1109, %v1104, %v1108
      %v1111 = vmul.f32 %v1103, %v1110
      %v1112 = vsub.f32 %v1100, %v1111
      %v1113 = vmul.f32 %v1112, %v1112
      %v1114 = vsel %vm438, %v1113, 0.0
      %1115 = vadd.xlane.f32.xlu0 %v1114
      %v1116 = vpop.xlane.xlu0 %1115
      %v1117 = vmul.f32 %v1116, %v1110
      %v1118 = vadd.f32 %v1117, 1e-12
      %v1119 = vrsqrt.pop %v1118
      %v1120 = vmul.f32 %v1119, %v1118
      %v1121 = vmul.f32 %v1120, %v1119
      %v1122 = vmul.f32 0.5, %v1121
      %v1123 = vsub.f32 1.5, %v1122
      %v1124 = vmul.f32 %v1119, %v1123
      %vm1125 = vweird.f32 %v1118
      %vm1126 = vweird.f32 %v1119
      %vm1127 = vmor %vm1125, %vm1126
      %v1128 = vsel %vm1127, %v1119, %v1124
      %v1129 = vmul.f32 %v1112, %v1128
      %v1130 = vperm.slane %v405, 1
      %v1131 = vmul.f32 %v1129, %v1130
      %v1132 = vperm.slane %v405, 2
      %v1133 = vadd.f32 %v1131, %v1132
      %v1134 = vld [vmem:[%s5] sm:$0xff]
      %v1135 = vld [vmem:[%s5 + $0x8] sm:$0xff]
      %v1136 = vld [vmem:[%s5 + $0x10] sm:$0xff]
      %v1137 = vld [vmem:[%s5 + $0x18] sm:$0xff]
      %v1138 = vld [vmem:[%s6] sm:$0x1]
      %v1140 = vperm.slane %v1138, 0
      %v1143 = vsel %vm438, %v1133, 0
      %1145 = vmatpush.msra.mxu0 0.0
      %1146 = vmatpush.msra.mxu0 0.0
      %1147 = vmatpush.msra.mxu0 0.0
      %1148 = vmatpush.msra.mxu0 0.0
      %1149 = vmatpush.msra.mxu0 0.0
      %1150 = vmatpush.msra.mxu0 0.0
      %1151 = vmatpush.msra.mxu0 0.0
      %1152 = vmatpush.msra.mxu0 0.0
      %1153 = vmatpush.msra.mxu0 0.0
      %1154 = vmatpush.msra.mxu0 0.0
      %1155 = vmatpush.msra.mxu0 0.0
      %1156 = vmatpush.msra.mxu0 0.0
      %1157 = vmatpush.msra.mxu0 %v1137
      %1158 = vmatpush.msra.mxu0 %v1136
      %1159 = vmatpush.msra.mxu0 %v1135
      %1160 = vmatpush.msra.mxu0 %v1134
      %1161 = vmatmul.f32.gmra.mxu0 %v1143
      %v1162 = vpop.f32.mrf.mxu0
      %v1163 = vadd.f32 %v1140, %v1162
      %1164 = vdwg.mxu0
      %v1165 = vmul.f32 %v1163, 0.5
      %v1166 = vrcp.pop 1.4142135
      %v1167 = vmul.f32 1.4142135, %v1166
      %v1168 = vsub.f32 1.0, %v1167
      %v1169 = vmul.f32 %v1166, %v1168
      %v1170 = vadd.f32 %v1166, %v1169
      %vm1171 = vweird.f32 %v1166
      %v1172 = vsel %vm1171, %v1166, %v1170
      %v1173 = vmul.f32 %v1163, %v1172
      %v1174 = vmul.f32 %v1173, %v1173
      %v1175 = vmin.f32 16.0, %v1174
      %v1176 = vmul.f32 %v1175, 2.1237322e-06
      %v1177 = vadd.f32 %v1176, 0.00028619796
      %v1178 = vmul.f32 %v1175, %v1177
      %v1179 = vadd.f32 %v1178, 0.0036580483
      %v1180 = vmul.f32 %v1175, %v1179
      %v1181 = vadd.f32 %v1180, 0.05243302
      %v1182 = vmul.f32 %v1175, %v1181
      %v1183 = vadd.f32 %v1182, 0.18741608
      %v1184 = vmul.f32 %v1175, %v1183
      %v1185 = vadd.f32 %v1184, 1.1283791
      %v1186 = vmul.f32 %v1173, %v1185
      %v1187 = vmul.f32 %v1175, 3.8918573e-05
      %v1188 = vadd.f32 %v1187, 0.001143296
      %v1189 = vmul.f32 %v1175, %v1188
      %v1190 = vadd.f32 %v1189, 0.014752088
      %v1191 = vmul.f32 %v1175, %v1190
      %v1192 = vadd.f32 %v1191, 0.112945676
      %v1193 = vmul.f32 %v1175, %v1192
      %v1194 = vadd.f32 %v1193, 0.4994258
      %v1195 = vmul.f32 %v1175, %v1194
      %v1196 = vadd.f32 %v1195, 1.0
      %v1197 = vrcp.pop %v1196
      %v1198 = vmul.f32 %v1196, %v1197
      %v1199 = vsub.f32 1.0, %v1198
      %v1200 = vmul.f32 %v1197, %v1199
      %v1201 = vadd.f32 %v1197, %v1200
      %vm1202 = vweird.f32 %v1196
      %vm1203 = vweird.f32 %v1197
      %vm1204 = vmor %vm1202, %vm1203
      %v1205 = vsel %vm1204, %v1197, %v1201
      %v1206 = vand.u32 2147483647, %v1196
      %vm1207 = vcmp.eq.f32.partialorder %v1206, 8.507059e+37
      %v1208 = vand.u32 %v1196, 2147483648
      %v1209 = vor.u32 1.1754944e-38, %v1208
      %v1210 = vsel %vm1207, %v1209, %v1205
      %v1211 = vmul.f32 %v1186, %v1210
      %v1212 = vmin.f32 %v1211, 1.0
      %v1213 = vmax.f32 %v1212, -1.0
      %v1214 = vadd.f32 %v1213, 1.0
      %v1215 = vmul.f32 %v1165, %v1214
      %v1216 = vld [vmem:[%s7] sm:$0xff]
      %v1217 = vld [vmem:[%s7 + $0x8] sm:$0xff]
      %v1218 = vld [vmem:[%s7 + $0x10] sm:$0xff]
      %v1219 = vld [vmem:[%s7 + $0x18] sm:$0xff]
      %v1220 = vld [vmem:[%s7 + $0x20] sm:$0xff]
      %v1221 = vld [vmem:[%s7 + $0x28] sm:$0xff]
      %v1222 = vld [vmem:[%s7 + $0x30] sm:$0xff]
      %v1223 = vld [vmem:[%s7 + $0x38] sm:$0xff]
      %v1224 = vperm.slane %v405, 3
      %vm1225 = vcmask 523264
      %v1227 = vsel %vm1225, %v1215, 0
      %1229 = vmatpush.msra.mxu0 0.0
      %1230 = vmatpush.msra.mxu0 0.0
      %1231 = vmatpush.msra.mxu0 0.0
      %1232 = vmatpush.msra.mxu0 0.0
      %1233 = vmatpush.msra.mxu0 0.0
      %1234 = vmatpush.msra.mxu0 0.0
      %1235 = vmatpush.msra.mxu0 0.0
      %1236 = vmatpush.msra.mxu0 0.0
      %1237 = vmatpush.msra.mxu0 %v1223
      %1238 = vmatpush.msra.mxu0 %v1222
      %1239 = vmatpush.msra.mxu0 %v1221
      %1240 = vmatpush.msra.mxu0 %v1220
      %1241 = vmatpush.msra.mxu0 %v1219
      %1242 = vmatpush.msra.mxu0 %v1218
      %1243 = vmatpush.msra.mxu0 %v1217
      %1244 = vmatpush.msra.mxu0 %v1216
      %1245 = vmatmul.f32.gmra.mxu0 %v1227
      %v1246 = vpop.f32.mrf.mxu0
      %v1247 = vadd.f32 %v1224, %v1246
      %1248 = vdwg.mxu0
      %v1249 = vadd.f32 %v1133, %v1247
      %v1250 = vsel %vm438, %v1249, 0.0
      %1251 = vadd.xlane.f32.xlu0 %v1250
      %v1252 = vpop.xlane.xlu0 %1251
      %v1253 = vmul.f32 %v1252, %v1110
      %v1254 = vsub.f32 %v1249, %v1253
      %v1255 = vmul.f32 %v1254, %v1254
      %v1256 = vsel %vm438, %v1255, 0.0
      %1257 = vadd.xlane.f32.xlu0 %v1256
      %v1258 = vpop.xlane.xlu0 %1257
      %v1259 = vmul.f32 %v1258, %v1110
      %v1260 = vadd.f32 %v1259, 1e-12
      %v1261 = vrsqrt.pop %v1260
      %v1262 = vmul.f32 %v1261, %v1260
      %v1263 = vmul.f32 %v1262, %v1261
      %v1264 = vmul.f32 0.5, %v1263
      %v1265 = vsub.f32 1.5, %v1264
      %v1266 = vmul.f32 %v1261, %v1265
      %vm1267 = vweird.f32 %v1260
      %vm1268 = vweird.f32 %v1261
      %vm1269 = vmor %vm1267, %vm1268
      %v1270 = vsel %vm1269, %v1261, %v1266
      %v1271 = vmul.f32 %v1254, %v1270
      %v1272 = vperm.slane %v405, 4
      %v1273 = vmul.f32 %v1271, %v1272
      %v1274 = vperm.slane %v405, 5
      %v1275 = vadd.f32 %v1273, %v1274
      %s1276 = scalar_lea.vmem %s4, 32
      %v1277 = vld [vmem:[%s1276] sm:$0xff]
      %v1278 = vld [vmem:[%s1276 + $0x8] sm:$0xff]
      %v1279 = vld [vmem:[%s1276 + $0x10] sm:$0xff]
      %v1280 = vld [vmem:[%s1276 + $0x18] sm:$0xff]
      %s1281 = scalar_lea.vmem %s8, 8
      %v1282 = vld [vmem:[%s1281] sm:$0x3f]
      %s1283 = scalar_lea.vmem %s2, 384
      %v1284 = vld [vmem:[%s1283] sm:$0xff]
      %v1285 = vld [vmem:[%s1283 + $0x8] sm:$0xff]
      %v1286 = vld [vmem:[%s1283 + $0x10] sm:$0xff]
      %v1287 = vld [vmem:[%s1283 + $0x18] sm:$0xff]
      %v1288 = vld [vmem:[%s1283 + $0x20] sm:$0xff]
      %v1289 = vld [vmem:[%s1283 + $0x28] sm:$0xff]
      %v1290 = vld [vmem:[%s1283 + $0x30] sm:$0xff]
      %v1291 = vld [vmem:[%s1283 + $0x38] sm:$0xff]
      %v1292 = vld [vmem:[%s1283 + $0x40] sm:$0xff]
      %v1293 = vld [vmem:[%s1283 + $0x48] sm:$0xff]
      %v1294 = vld [vmem:[%s1283 + $0x50] sm:$0xff]
      %v1295 = vld [vmem:[%s1283 + $0x58] sm:$0xff]
      %v1296 = vld [vmem:[%s1283 + $0x60] sm:$0xff]
      %v1297 = vld [vmem:[%s1283 + $0x68] sm:$0xff]
      %v1298 = vld [vmem:[%s1283 + $0x70] sm:$0xff]
      %v1299 = vld [vmem:[%s1283 + $0x78] sm:$0xff]
      %s1300 = scalar_lea.vmem %s3, 12
      %v1301 = vld [vmem:[%s1300] sm:$0x1]
      %v1302 = vld [vmem:[%s1300 + $0x1] sm:$0x1]
      %v1303 = vld [vmem:[%s1300 + $0x2] sm:$0x1]
      %v1304 = vld [vmem:[%s1300 + $0x3] sm:$0x1]
      %v1309 = vperm.slane %v1301, 0
      %v1310 = vperm.slane %v1302, 0
      %v1311 = vperm.slane %v1303, 0
      %v1312 = vperm.slane %v1304, 0
      %v1318 = vsel %vm438, %v1275, 0
      %1320 = vmatpush.msra.mxu0 0.0
      %1321 = vmatpush.msra.mxu0 0.0
      %1322 = vmatpush.msra.mxu0 0.0
      %1323 = vmatpush.msra.mxu0 0.0
      %1324 = vmatpush.msra.mxu0 0.0
      %1325 = vmatpush.msra.mxu0 0.0
      %1326 = vmatpush.msra.mxu0 0.0
      %1327 = vmatpush.msra.mxu0 0.0
      %1328 = vmatpush.msra.mxu0 0.0
      %1329 = vmatpush.msra.mxu0 0.0
      %1330 = vmatpush.msra.mxu0 0.0
      %1331 = vmatpush.msra.mxu0 0.0
      %1332 = vmatpush.msra.mxu0 %v1287
      %1333 = vmatpush.msra.mxu0 %v1286
      %1334 = vmatpush.msra.mxu0 %v1285
      %1335 = vmatpush.msra.mxu0 %v1284
      %1336 = vmatmul.f32.gmra.mxu0 %v1318
      %v1337 = vpop.f32.mrf.mxu0
      %v1338 = vadd.f32 %v1309, %v1337
      %1339 = vdwg.mxu0
      %1340 = vmatpush.msra.mxu0 0.0
      %1341 = vmatpush.msra.mxu0 0.0
      %1342 = vmatpush.msra.mxu0 0.0
      %1343 = vmatpush.msra.mxu0 0.0
      %1344 = vmatpush.msra.mxu0 0.0
      %1345 = vmatpush.msra.mxu0 0.0
      %1346 = vmatpush.msra.mxu0 0.0
      %1347 = vmatpush.msra.mxu0 0.0
      %1348 = vmatpush.msra.mxu0 0.0
      %1349 = vmatpush.msra.mxu0 0.0
      %1350 = vmatpush.msra.mxu0 0.0
      %1351 = vmatpush.msra.mxu0 0.0
      %1352 = vmatpush.msra.mxu0 %v1291
      %1353 = vmatpush.msra.mxu0 %v1290
      %1354 = vmatpush.msra.mxu0 %v1289
      %1355 = vmatpush.msra.mxu0 %v1288
      %1356 = vmatmul.f32.gmra.mxu0 %v1318
      %v1357 = vpop.f32.mrf.mxu0
      %v1358 = vadd.f32 %v1310, %v1357
      %1359 = vdwg.mxu0
      %1360 = vmatpush.msra.mxu0 0.0
      %1361 = vmatpush.msra.mxu0 0.0
      %1362 = vmatpush.msra.mxu0 0.0
      %1363 = vmatpush.msra.mxu0 0.0
      %1364 = vmatpush.msra.mxu0 0.0
      %1365 = vmatpush.msra.mxu0 0.0
      %1366 = vmatpush.msra.mxu0 0.0
      %1367 = vmatpush.msra.mxu0 0.0
      %1368 = vmatpush.msra.mxu0 0.0
      %1369 = vmatpush.msra.mxu0 0.0
      %1370 = vmatpush.msra.mxu0 0.0
      %1371 = vmatpush.msra.mxu0 0.0
      %1372 = vmatpush.msra.mxu0 %v1295
      %1373 = vmatpush.msra.mxu0 %v1294
      %1374 = vmatpush.msra.mxu0 %v1293
      %1375 = vmatpush.msra.mxu0 %v1292
      %1376 = vmatmul.f32.gmra.mxu0 %v1318
      %v1377 = vpop.f32.mrf.mxu0
      %v1378 = vadd.f32 %v1311, %v1377
      %1379 = vdwg.mxu0
      %1380 = vmatpush.msra.mxu0 0.0
      %1381 = vmatpush.msra.mxu0 0.0
      %1382 = vmatpush.msra.mxu0 0.0
      %1383 = vmatpush.msra.mxu0 0.0
      %1384 = vmatpush.msra.mxu0 0.0
      %1385 = vmatpush.msra.mxu0 0.0
      %1386 = vmatpush.msra.mxu0 0.0
      %1387 = vmatpush.msra.mxu0 0.0
      %1388 = vmatpush.msra.mxu0 0.0
      %1389 = vmatpush.msra.mxu0 0.0
      %1390 = vmatpush.msra.mxu0 0.0
      %1391 = vmatpush.msra.mxu0 0.0
      %1392 = vmatpush.msra.mxu0 %v1299
      %1393 = vmatpush.msra.mxu0 %v1298
      %1394 = vmatpush.msra.mxu0 %v1297
      %1395 = vmatpush.msra.mxu0 %v1296
      %1396 = vmatmul.f32.gmra.mxu0 %v1318
      %v1397 = vpop.f32.mrf.mxu0
      %v1398 = vadd.f32 %v1312, %v1397
      %1399 = vdwg.mxu0
      %s1400 = scalar_lea.vmem %s2, 512
      %v1401 = vld [vmem:[%s1400] sm:$0xff]
      %v1402 = vld [vmem:[%s1400 + $0x8] sm:$0xff]
      %v1403 = vld [vmem:[%s1400 + $0x10] sm:$0xff]
      %v1404 = vld [vmem:[%s1400 + $0x18] sm:$0xff]
      %v1405 = vld [vmem:[%s1400 + $0x20] sm:$0xff]
      %v1406 = vld [vmem:[%s1400 + $0x28] sm:$0xff]
      %v1407 = vld [vmem:[%s1400 + $0x30] sm:$0xff]
      %v1408 = vld [vmem:[%s1400 + $0x38] sm:$0xff]
      %v1409 = vld [vmem:[%s1400 + $0x40] sm:$0xff]
      %v1410 = vld [vmem:[%s1400 + $0x48] sm:$0xff]
      %v1411 = vld [vmem:[%s1400 + $0x50] sm:$0xff]
      %v1412 = vld [vmem:[%s1400 + $0x58] sm:$0xff]
      %v1413 = vld [vmem:[%s1400 + $0x60] sm:$0xff]
      %v1414 = vld [vmem:[%s1400 + $0x68] sm:$0xff]
      %v1415 = vld [vmem:[%s1400 + $0x70] sm:$0xff]
      %v1416 = vld [vmem:[%s1400 + $0x78] sm:$0xff]
      %s1417 = scalar_lea.vmem %s3, 16
      %v1418 = vld [vmem:[%s1417] sm:$0x1]
      %v1419 = vld [vmem:[%s1417 + $0x1] sm:$0x1]
      %v1420 = vld [vmem:[%s1417 + $0x2] sm:$0x1]
      %v1421 = vld [vmem:[%s1417 + $0x3] sm:$0x1]
      %v1426 = vperm.slane %v1418, 0
      %v1427 = vperm.slane %v1419, 0
      %v1428 = vperm.slane %v1420, 0
      %v1429 = vperm.slane %v1421, 0
      %1434 = vmatpush.msra.mxu0 0.0
      %1435 = vmatpush.msra.mxu0 0.0
      %1436 = vmatpush.msra.mxu0 0.0
      %1437 = vmatpush.msra.mxu0 0.0
      %1438 = vmatpush.msra.mxu0 0.0
      %1439 = vmatpush.msra.mxu0 0.0
      %1440 = vmatpush.msra.mxu0 0.0
      %1441 = vmatpush.msra.mxu0 0.0
      %1442 = vmatpush.msra.mxu0 0.0
      %1443 = vmatpush.msra.mxu0 0.0
      %1444 = vmatpush.msra.mxu0 0.0
      %1445 = vmatpush.msra.mxu0 0.0
      %1446 = vmatpush.msra.mxu0 %v1404
      %1447 = vmatpush.msra.mxu0 %v1403
      %1448 = vmatpush.msra.mxu0 %v1402
      %1449 = vmatpush.msra.mxu0 %v1401
      %1450 = vmatmul.f32.gmra.mxu0 %v1318
      %v1451 = vpop.f32.mrf.mxu0
      %v1452 = vadd.f32 %v1426, %v1451
      %1453 = vdwg.mxu0
      %1454 = vmatpush.msra.mxu0 0.0
      %1455 = vmatpush.msra.mxu0 0.0
      %1456 = vmatpush.msra.mxu0 0.0
      %1457 = vmatpush.msra.mxu0 0.0
      %1458 = vmatpush.msra.mxu0 0.0
      %1459 = vmatpush.msra.mxu0 0.0
      %1460 = vmatpush.msra.mxu0 0.0
      %1461 = vmatpush.msra.mxu0 0.0
      %1462 = vmatpush.msra.mxu0 0.0
      %1463 = vmatpush.msra.mxu0 0.0
      %1464 = vmatpush.msra.mxu0 0.0
      %1465 = vmatpush.msra.mxu0 0.0
      %1466 = vmatpush.msra.mxu0 %v1408
      %1467 = vmatpush.msra.mxu0 %v1407
      %1468 = vmatpush.msra.mxu0 %v1406
      %1469 = vmatpush.msra.mxu0 %v1405
      %1470 = vmatmul.f32.gmra.mxu0 %v1318
      %v1471 = vpop.f32.mrf.mxu0
      %v1472 = vadd.f32 %v1427, %v1471
      %1473 = vdwg.mxu0
      %1474 = vmatpush.msra.mxu0 0.0
      %1475 = vmatpush.msra.mxu0 0.0
      %1476 = vmatpush.msra.mxu0 0.0
      %1477 = vmatpush.msra.mxu0 0.0
      %1478 = vmatpush.msra.mxu0 0.0
      %1479 = vmatpush.msra.mxu0 0.0
      %1480 = vmatpush.msra.mxu0 0.0
      %1481 = vmatpush.msra.mxu0 0.0
      %1482 = vmatpush.msra.mxu0 0.0
      %1483 = vmatpush.msra.mxu0 0.0
      %1484 = vmatpush.msra.mxu0 0.0
      %1485 = vmatpush.msra.mxu0 0.0
      %1486 = vmatpush.msra.mxu0 %v1412
      %1487 = vmatpush.msra.mxu0 %v1411
      %1488 = vmatpush.msra.mxu0 %v1410
      %1489 = vmatpush.msra.mxu0 %v1409
      %1490 = vmatmul.f32.gmra.mxu0 %v1318
      %v1491 = vpop.f32.mrf.mxu0
      %v1492 = vadd.f32 %v1428, %v1491
      %1493 = vdwg.mxu0
      %1494 = vmatpush.msra.mxu0 0.0
      %1495 = vmatpush.msra.mxu0 0.0
      %1496 = vmatpush.msra.mxu0 0.0
      %1497 = vmatpush.msra.mxu0 0.0
      %1498 = vmatpush.msra.mxu0 0.0
      %1499 = vmatpush.msra.mxu0 0.0
      %1500 = vmatpush.msra.mxu0 0.0
      %1501 = vmatpush.msra.mxu0 0.0
      %1502 = vmatpush.msra.mxu0 0.0
      %1503 = vmatpush.msra.mxu0 0.0
      %1504 = vmatpush.msra.mxu0 0.0
      %1505 = vmatpush.msra.mxu0 0.0
      %1506 = vmatpush.msra.mxu0 %v1416
      %1507 = vmatpush.msra.mxu0 %v1415
      %1508 = vmatpush.msra.mxu0 %v1414
      %1509 = vmatpush.msra.mxu0 %v1413
      %1510 = vmatmul.f32.gmra.mxu0 %v1318
      %v1511 = vpop.f32.mrf.mxu0
      %v1512 = vadd.f32 %v1429, %v1511
      %1513 = vdwg.mxu0
      %s1514 = scalar_lea.vmem %s2, 640
      %v1515 = vld [vmem:[%s1514] sm:$0xff]
      %v1516 = vld [vmem:[%s1514 + $0x8] sm:$0xff]
      %v1517 = vld [vmem:[%s1514 + $0x10] sm:$0xff]
      %v1518 = vld [vmem:[%s1514 + $0x18] sm:$0xff]
      %v1519 = vld [vmem:[%s1514 + $0x20] sm:$0xff]
      %v1520 = vld [vmem:[%s1514 + $0x28] sm:$0xff]
      %v1521 = vld [vmem:[%s1514 + $0x30] sm:$0xff]
      %v1522 = vld [vmem:[%s1514 + $0x38] sm:$0xff]
      %v1523 = vld [vmem:[%s1514 + $0x40] sm:$0xff]
      %v1524 = vld [vmem:[%s1514 + $0x48] sm:$0xff]
      %v1525 = vld [vmem:[%s1514 + $0x50] sm:$0xff]
      %v1526 = vld [vmem:[%s1514 + $0x58] sm:$0xff]
      %v1527 = vld [vmem:[%s1514 + $0x60] sm:$0xff]
      %v1528 = vld [vmem:[%s1514 + $0x68] sm:$0xff]
      %v1529 = vld [vmem:[%s1514 + $0x70] sm:$0xff]
      %v1530 = vld [vmem:[%s1514 + $0x78] sm:$0xff]
      %s1531 = scalar_lea.vmem %s3, 20
      %v1532 = vld [vmem:[%s1531] sm:$0x1]
      %v1533 = vld [vmem:[%s1531 + $0x1] sm:$0x1]
      %v1534 = vld [vmem:[%s1531 + $0x2] sm:$0x1]
      %v1535 = vld [vmem:[%s1531 + $0x3] sm:$0x1]
      %v1540 = vperm.slane %v1532, 0
      %v1541 = vperm.slane %v1533, 0
      %v1542 = vperm.slane %v1534, 0
      %v1543 = vperm.slane %v1535, 0
      %1548 = vmatpush.msra.mxu0 0.0
      %1549 = vmatpush.msra.mxu0 0.0
      %1550 = vmatpush.msra.mxu0 0.0
      %1551 = vmatpush.msra.mxu0 0.0
      %1552 = vmatpush.msra.mxu0 0.0
      %1553 = vmatpush.msra.mxu0 0.0
      %1554 = vmatpush.msra.mxu0 0.0
      %1555 = vmatpush.msra.mxu0 0.0
      %1556 = vmatpush.msra.mxu0 0.0
      %1557 = vmatpush.msra.mxu0 0.0
      %1558 = vmatpush.msra.mxu0 0.0
      %1559 = vmatpush.msra.mxu0 0.0
      %1560 = vmatpush.msra.mxu0 %v1518
      %1561 = vmatpush.msra.mxu0 %v1517
      %1562 = vmatpush.msra.mxu0 %v1516
      %1563 = vmatpush.msra.mxu0 %v1515
      %1564 = vmatmul.f32.gmra.mxu0 %v1318
      %v1565 = vpop.f32.mrf.mxu0
      %v1566 = vadd.f32 %v1540, %v1565
      %1567 = vdwg.mxu0
      %1568 = vmatpush.msra.mxu0 0.0
      %1569 = vmatpush.msra.mxu0 0.0
      %1570 = vmatpush.msra.mxu0 0.0
      %1571 = vmatpush.msra.mxu0 0.0
      %1572 = vmatpush.msra.mxu0 0.0
      %1573 = vmatpush.msra.mxu0 0.0
      %1574 = vmatpush.msra.mxu0 0.0
      %1575 = vmatpush.msra.mxu0 0.0
      %1576 = vmatpush.msra.mxu0 0.0
      %1577 = vmatpush.msra.mxu0 0.0
      %1578 = vmatpush.msra.mxu0 0.0
      %1579 = vmatpush.msra.mxu0 0.0
      %1580 = vmatpush.msra.mxu0 %v1522
      %1581 = vmatpush.msra.mxu0 %v1521
      %1582 = vmatpush.msra.mxu0 %v1520
      %1583 = vmatpush.msra.mxu0 %v1519
      %1584 = vmatmul.f32.gmra.mxu0 %v1318
      %v1585 = vpop.f32.mrf.mxu0
      %v1586 = vadd.f32 %v1541, %v1585
      %1587 = vdwg.mxu0
      %1588 = vmatpush.msra.mxu0 0.0
      %1589 = vmatpush.msra.mxu0 0.0
      %1590 = vmatpush.msra.mxu0 0.0
      %1591 = vmatpush.msra.mxu0 0.0
      %1592 = vmatpush.msra.mxu0 0.0
      %1593 = vmatpush.msra.mxu0 0.0
      %1594 = vmatpush.msra.mxu0 0.0
      %1595 = vmatpush.msra.mxu0 0.0
      %1596 = vmatpush.msra.mxu0 0.0
      %1597 = vmatpush.msra.mxu0 0.0
      %1598 = vmatpush.msra.mxu0 0.0
      %1599 = vmatpush.msra.mxu0 0.0
      %1600 = vmatpush.msra.mxu0 %v1526
      %1601 = vmatpush.msra.mxu0 %v1525
      %1602 = vmatpush.msra.mxu0 %v1524
      %1603 = vmatpush.msra.mxu0 %v1523
      %1604 = vmatmul.f32.gmra.mxu0 %v1318
      %v1605 = vpop.f32.mrf.mxu0
      %v1606 = vadd.f32 %v1542, %v1605
      %1607 = vdwg.mxu0
      %1608 = vmatpush.msra.mxu0 0.0
      %1609 = vmatpush.msra.mxu0 0.0
      %1610 = vmatpush.msra.mxu0 0.0
      %1611 = vmatpush.msra.mxu0 0.0
      %1612 = vmatpush.msra.mxu0 0.0
      %1613 = vmatpush.msra.mxu0 0.0
      %1614 = vmatpush.msra.mxu0 0.0
      %1615 = vmatpush.msra.mxu0 0.0
      %1616 = vmatpush.msra.mxu0 0.0
      %1617 = vmatpush.msra.mxu0 0.0
      %1618 = vmatpush.msra.mxu0 0.0
      %1619 = vmatpush.msra.mxu0 0.0
      %1620 = vmatpush.msra.mxu0 %v1530
      %1621 = vmatpush.msra.mxu0 %v1529
      %1622 = vmatpush.msra.mxu0 %v1528
      %1623 = vmatpush.msra.mxu0 %v1527
      %1624 = vmatmul.f32.gmra.mxu0 %v1318
      %v1625 = vpop.f32.mrf.mxu0
      %v1626 = vadd.f32 %v1543, %v1625
      %1627 = vdwg.mxu0
      %v1629 = vsel %vm750, %v1338, 0
      %v1632 = vsel %vm750, %v1452, 0
      %1634 = vmatpush.xpose.msra.mxu0 0.0
      %1635 = vmatpush.xpose.msra.mxu0 0.0
      %1636 = vmatpush.xpose.msra.mxu0 0.0
      %1637 = vmatpush.xpose.msra.mxu0 0.0
      %1638 = vmatpush.xpose.msra.mxu0 0.0
      %1639 = vmatpush.xpose.msra.mxu0 0.0
      %1640 = vmatpush.xpose.msra.mxu0 0.0
      %1641 = vmatpush.xpose.msra.mxu0 0.0
      %1642 = vmatpush.xpose.msra.mxu0 0.0
      %1643 = vmatpush.xpose.msra.mxu0 0.0
      %1644 = vmatpush.xpose.msra.mxu0 0.0
      %1645 = vmatpush.xpose.msra.mxu0 0.0
      %1646 = vmatpush.xpose.msra.mxu0 0.0
      %1647 = vmatpush.xpose.msra.mxu0 0.0
      %1648 = vmatpush.xpose.msra.mxu0 0.0
      %1649 = vmatpush.xpose.msra.mxu0 %v1632
      %1650 = vmatmul.f32.gmra.mxu0 %v1629
      %v1651 = vpop.f32.mrf.mxu0
      %v1652 = vadd.f32 0.0, %v1651
      %1653 = vdwg.mxu0
      %v1655 = vsel %vm750, %v1358, 0
      %v1658 = vsel %vm750, %v1472, 0
      %1660 = vmatpush.xpose.msra.mxu0 0.0
      %1661 = vmatpush.xpose.msra.mxu0 0.0
      %1662 = vmatpush.xpose.msra.mxu0 0.0
      %1663 = vmatpush.xpose.msra.mxu0 0.0
      %1664 = vmatpush.xpose.msra.mxu0 0.0
      %1665 = vmatpush.xpose.msra.mxu0 0.0
      %1666 = vmatpush.xpose.msra.mxu0 0.0
      %1667 = vmatpush.xpose.msra.mxu0 0.0
      %1668 = vmatpush.xpose.msra.mxu0 0.0
      %1669 = vmatpush.xpose.msra.mxu0 0.0
      %1670 = vmatpush.xpose.msra.mxu0 0.0
      %1671 = vmatpush.xpose.msra.mxu0 0.0
      %1672 = vmatpush.xpose.msra.mxu0 0.0
      %1673 = vmatpush.xpose.msra.mxu0 0.0
      %1674 = vmatpush.xpose.msra.mxu0 0.0
      %1675 = vmatpush.xpose.msra.mxu0 %v1658
      %1676 = vmatmul.f32.gmra.mxu0 %v1655
      %v1677 = vpop.f32.mrf.mxu0
      %v1678 = vadd.f32 0.0, %v1677
      %1679 = vdwg.mxu0
      %v1681 = vsel %vm750, %v1378, 0
      %v1684 = vsel %vm750, %v1492, 0
      %1686 = vmatpush.xpose.msra.mxu0 0.0
      %1687 = vmatpush.xpose.msra.mxu0 0.0
      %1688 = vmatpush.xpose.msra.mxu0 0.0
      %1689 = vmatpush.xpose.msra.mxu0 0.0
      %1690 = vmatpush.xpose.msra.mxu0 0.0
      %1691 = vmatpush.xpose.msra.mxu0 0.0
      %1692 = vmatpush.xpose.msra.mxu0 0.0
      %1693 = vmatpush.xpose.msra.mxu0 0.0
      %1694 = vmatpush.xpose.msra.mxu0 0.0
      %1695 = vmatpush.xpose.msra.mxu0 0.0
      %1696 = vmatpush.xpose.msra.mxu0 0.0
      %1697 = vmatpush.xpose.msra.mxu0 0.0
      %1698 = vmatpush.xpose.msra.mxu0 0.0
      %1699 = vmatpush.xpose.msra.mxu0 0.0
      %1700 = vmatpush.xpose.msra.mxu0 0.0
      %1701 = vmatpush.xpose.msra.mxu0 %v1684
      %1702 = vmatmul.f32.gmra.mxu0 %v1681
      %v1703 = vpop.f32.mrf.mxu0
      %v1704 = vadd.f32 0.0, %v1703
      %1705 = vdwg.mxu0
      %v1707 = vsel %vm750, %v1398, 0
      %v1710 = vsel %vm750, %v1512, 0
      %1712 = vmatpush.xpose.msra.mxu0 0.0
      %1713 = vmatpush.xpose.msra.mxu0 0.0
      %1714 = vmatpush.xpose.msra.mxu0 0.0
      %1715 = vmatpush.xpose.msra.mxu0 0.0
      %1716 = vmatpush.xpose.msra.mxu0 0.0
      %1717 = vmatpush.xpose.msra.mxu0 0.0
      %1718 = vmatpush.xpose.msra.mxu0 0.0
      %1719 = vmatpush.xpose.msra.mxu0 0.0
      %1720 = vmatpush.xpose.msra.mxu0 0.0
      %1721 = vmatpush.xpose.msra.mxu0 0.0
      %1722 = vmatpush.xpose.msra.mxu0 0.0
      %1723 = vmatpush.xpose.msra.mxu0 0.0
      %1724 = vmatpush.xpose.msra.mxu0 0.0
      %1725 = vmatpush.xpose.msra.mxu0 0.0
      %1726 = vmatpush.xpose.msra.mxu0 0.0
      %1727 = vmatpush.xpose.msra.mxu0 %v1710
      %1728 = vmatmul.f32.gmra.mxu0 %v1707
      %v1729 = vpop.f32.mrf.mxu0
      %v1730 = vadd.f32 0.0, %v1729
      %1731 = vdwg.mxu0
      %v1732 = vmul.f32 %v1652, 0.35355338
      %v1733 = vmul.f32 %v1678, 0.35355338
      %v1734 = vmul.f32 %v1704, 0.35355338
      %v1735 = vmul.f32 %v1730, 0.35355338
      %v1736 = vadd.f32 %v1732, %v399
      %v1737 = vadd.f32 %v1733, %v399
      %v1738 = vadd.f32 %v1734, %v399
      %v1739 = vadd.f32 %v1735, %v399
      %v1740 = vsel %vm750, %v1736, -inf
      %1741 = vmax.xlane.f32.xlu0 %v1740
      %v1742 = vpop.xlane.xlu0 %1741
      %v1743 = vsel %vm750, %v1737, -inf
      %1744 = vmax.xlane.f32.xlu0 %v1743
      %v1745 = vpop.xlane.xlu0 %1744
      %v1746 = vsel %vm750, %v1738, -inf
      %1747 = vmax.xlane.f32.xlu0 %v1746
      %v1748 = vpop.xlane.xlu0 %1747
      %v1749 = vsel %vm750, %v1739, -inf
      %1750 = vmax.xlane.f32.xlu0 %v1749
      %v1751 = vpop.xlane.xlu0 %1750
      %v1752 = vsub.f32 %v1736, %v1742
      %v1753 = vsub.f32 %v1737, %v1745
      %v1754 = vsub.f32 %v1738, %v1748
      %v1755 = vsub.f32 %v1739, %v1751
      %v1756 = vmul.f32 %v1752, 1.442695
      %v1757 = vpow.pop %v1756
      %v1758 = vmul.f32 %v1753, 1.442695
      %v1759 = vpow.pop %v1758
      %v1760 = vmul.f32 %v1754, 1.442695
      %v1761 = vpow.pop %v1760
      %v1762 = vmul.f32 %v1755, 1.442695
      %v1763 = vpow.pop %v1762
      %v1764 = vsel %vm750, %v1757, 0.0
      %1765 = vadd.xlane.f32.xlu0 %v1764
      %v1766 = vpop.xlane.xlu0 %1765
      %v1767 = vsel %vm750, %v1759, 0.0
      %1768 = vadd.xlane.f32.xlu0 %v1767
      %v1769 = vpop.xlane.xlu0 %1768
      %v1770 = vsel %vm750, %v1761, 0.0
      %1771 = vadd.xlane.f32.xlu0 %v1770
      %v1772 = vpop.xlane.xlu0 %1771
      %v1773 = vsel %vm750, %v1763, 0.0
      %1774 = vadd.xlane.f32.xlu0 %v1773
      %v1775 = vpop.xlane.xlu0 %1774
      %v1776 = vrcp.pop %v1766
      %v1777 = vrcp.pop %v1769
      %v1778 = vrcp.pop %v1772
      %v1779 = vrcp.pop %v1775
      %v1780 = vmul.f32 %v1757, %v1776
      %v1781 = vmul.f32 %v1759, %v1777
      %v1782 = vmul.f32 %v1761, %v1778
      %v1783 = vmul.f32 %v1763, %v1779
      %v1785 = vsel %vm750, %v1780, 0
      %1787 = vmatpush.msra.mxu0 0.0
      %1788 = vmatpush.msra.mxu0 0.0
      %1789 = vmatpush.msra.mxu0 0.0
      %1790 = vmatpush.msra.mxu0 0.0
      %1791 = vmatpush.msra.mxu0 0.0
      %1792 = vmatpush.msra.mxu0 0.0
      %1793 = vmatpush.msra.mxu0 0.0
      %1794 = vmatpush.msra.mxu0 0.0
      %1795 = vmatpush.msra.mxu0 0.0
      %1796 = vmatpush.msra.mxu0 0.0
      %1797 = vmatpush.msra.mxu0 0.0
      %1798 = vmatpush.msra.mxu0 0.0
      %1799 = vmatpush.msra.mxu0 0.0
      %1800 = vmatpush.msra.mxu0 0.0
      %1801 = vmatpush.msra.mxu0 0.0
      %1802 = vmatpush.msra.mxu0 %v1566
      %1803 = vmatmul.f32.gmra.mxu0 %v1785
      %v1804 = vpop.f32.mrf.mxu0
      %v1805 = vadd.f32 0.0, %v1804
      %1806 = vdwg.mxu0
      %v1808 = vsel %vm750, %v1781, 0
      %1810 = vmatpush.msra.mxu0 0.0
      %1811 = vmatpush.msra.mxu0 0.0
      %1812 = vmatpush.msra.mxu0 0.0
      %1813 = vmatpush.msra.mxu0 0.0
      %1814 = vmatpush.msra.mxu0 0.0
      %1815 = vmatpush.msra.mxu0 0.0
      %1816 = vmatpush.msra.mxu0 0.0
      %1817 = vmatpush.msra.mxu0 0.0
      %1818 = vmatpush.msra.mxu0 0.0
      %1819 = vmatpush.msra.mxu0 0.0
      %1820 = vmatpush.msra.mxu0 0.0
      %1821 = vmatpush.msra.mxu0 0.0
      %1822 = vmatpush.msra.mxu0 0.0
      %1823 = vmatpush.msra.mxu0 0.0
      %1824 = vmatpush.msra.mxu0 0.0
      %1825 = vmatpush.msra.mxu0 %v1586
      %1826 = vmatmul.f32.gmra.mxu0 %v1808
      %v1827 = vpop.f32.mrf.mxu0
      %v1828 = vadd.f32 0.0, %v1827
      %1829 = vdwg.mxu0
      %v1831 = vsel %vm750, %v1782, 0
      %1833 = vmatpush.msra.mxu0 0.0
      %1834 = vmatpush.msra.mxu0 0.0
      %1835 = vmatpush.msra.mxu0 0.0
      %1836 = vmatpush.msra.mxu0 0.0
      %1837 = vmatpush.msra.mxu0 0.0
      %1838 = vmatpush.msra.mxu0 0.0
      %1839 = vmatpush.msra.mxu0 0.0
      %1840 = vmatpush.msra.mxu0 0.0
      %1841 = vmatpush.msra.mxu0 0.0
      %1842 = vmatpush.msra.mxu0 0.0
      %1843 = vmatpush.msra.mxu0 0.0
      %1844 = vmatpush.msra.mxu0 0.0
      %1845 = vmatpush.msra.mxu0 0.0
      %1846 = vmatpush.msra.mxu0 0.0
      %1847 = vmatpush.msra.mxu0 0.0
      %1848 = vmatpush.msra.mxu0 %v1606
      %1849 = vmatmul.f32.gmra.mxu0 %v1831
      %v1850 = vpop.f32.mrf.mxu0
      %v1851 = vadd.f32 0.0, %v1850
      %1852 = vdwg.mxu0
      %v1854 = vsel %vm750, %v1783, 0
      %1856 = vmatpush.msra.mxu0 0.0
      %1857 = vmatpush.msra.mxu0 0.0
      %1858 = vmatpush.msra.mxu0 0.0
      %1859 = vmatpush.msra.mxu0 0.0
      %1860 = vmatpush.msra.mxu0 0.0
      %1861 = vmatpush.msra.mxu0 0.0
      %1862 = vmatpush.msra.mxu0 0.0
      %1863 = vmatpush.msra.mxu0 0.0
      %1864 = vmatpush.msra.mxu0 0.0
      %1865 = vmatpush.msra.mxu0 0.0
      %1866 = vmatpush.msra.mxu0 0.0
      %1867 = vmatpush.msra.mxu0 0.0
      %1868 = vmatpush.msra.mxu0 0.0
      %1869 = vmatpush.msra.mxu0 0.0
      %1870 = vmatpush.msra.mxu0 0.0
      %1871 = vmatpush.msra.mxu0 %v1626
      %1872 = vmatmul.f32.gmra.mxu0 %v1854
      %v1873 = vpop.f32.mrf.mxu0
      %v1874 = vadd.f32 0.0, %v1873
      %1875 = vdwg.mxu0
      %v1877 = vsel %vm750, %v1805, 0
      %1879 = vmatpush.msra.mxu0 0.0
      %1880 = vmatpush.msra.mxu0 0.0
      %1881 = vmatpush.msra.mxu0 0.0
      %1882 = vmatpush.msra.mxu0 0.0
      %1883 = vmatpush.msra.mxu0 0.0
      %1884 = vmatpush.msra.mxu0 0.0
      %1885 = vmatpush.msra.mxu0 0.0
      %1886 = vmatpush.msra.mxu0 0.0
      %1887 = vmatpush.msra.mxu0 0.0
      %1888 = vmatpush.msra.mxu0 0.0
      %1889 = vmatpush.msra.mxu0 0.0
      %1890 = vmatpush.msra.mxu0 0.0
      %1891 = vmatpush.msra.mxu0 0.0
      %1892 = vmatpush.msra.mxu0 0.0
      %1893 = vmatpush.msra.mxu0 0.0
      %1894 = vmatpush.msra.mxu0 %v1277
      %1895 = vmatmul.f32.gmra.mxu0 %v1877
      %v1896 = vpop.f32.mrf.mxu0
      %v1897 = vadd.f32 0.0, %v1896
      %1898 = vdwg.mxu0
      %v1900 = vsel %vm750, %v1828, 0
      %1902 = vmatpush.msra.mxu0 0.0
      %1903 = vmatpush.msra.mxu0 0.0
      %1904 = vmatpush.msra.mxu0 0.0
      %1905 = vmatpush.msra.mxu0 0.0
      %1906 = vmatpush.msra.mxu0 0.0
      %1907 = vmatpush.msra.mxu0 0.0
      %1908 = vmatpush.msra.mxu0 0.0
      %1909 = vmatpush.msra.mxu0 0.0
      %1910 = vmatpush.msra.mxu0 0.0
      %1911 = vmatpush.msra.mxu0 0.0
      %1912 = vmatpush.msra.mxu0 0.0
      %1913 = vmatpush.msra.mxu0 0.0
      %1914 = vmatpush.msra.mxu0 0.0
      %1915 = vmatpush.msra.mxu0 0.0
      %1916 = vmatpush.msra.mxu0 0.0
      %1917 = vmatpush.msra.mxu0 %v1278
      %1918 = vmatmul.f32.gmra.mxu0 %v1900
      %v1919 = vpop.f32.mrf.mxu0
      %v1920 = vadd.f32 0.0, %v1919
      %1921 = vdwg.mxu0
      %v1923 = vsel %vm750, %v1851, 0
      %1925 = vmatpush.msra.mxu0 0.0
      %1926 = vmatpush.msra.mxu0 0.0
      %1927 = vmatpush.msra.mxu0 0.0
      %1928 = vmatpush.msra.mxu0 0.0
      %1929 = vmatpush.msra.mxu0 0.0
      %1930 = vmatpush.msra.mxu0 0.0
      %1931 = vmatpush.msra.mxu0 0.0
      %1932 = vmatpush.msra.mxu0 0.0
      %1933 = vmatpush.msra.mxu0 0.0
      %1934 = vmatpush.msra.mxu0 0.0
      %1935 = vmatpush.msra.mxu0 0.0
      %1936 = vmatpush.msra.mxu0 0.0
      %1937 = vmatpush.msra.mxu0 0.0
      %1938 = vmatpush.msra.mxu0 0.0
      %1939 = vmatpush.msra.mxu0 0.0
      %1940 = vmatpush.msra.mxu0 %v1279
      %1941 = vmatmul.f32.gmra.mxu0 %v1923
      %v1942 = vpop.f32.mrf.mxu0
      %v1943 = vadd.f32 0.0, %v1942
      %1944 = vdwg.mxu0
      %v1946 = vsel %vm750, %v1874, 0
      %1948 = vmatpush.msra.mxu0 0.0
      %1949 = vmatpush.msra.mxu0 0.0
      %1950 = vmatpush.msra.mxu0 0.0
      %1951 = vmatpush.msra.mxu0 0.0
      %1952 = vmatpush.msra.mxu0 0.0
      %1953 = vmatpush.msra.mxu0 0.0
      %1954 = vmatpush.msra.mxu0 0.0
      %1955 = vmatpush.msra.mxu0 0.0
      %1956 = vmatpush.msra.mxu0 0.0
      %1957 = vmatpush.msra.mxu0 0.0
      %1958 = vmatpush.msra.mxu0 0.0
      %1959 = vmatpush.msra.mxu0 0.0
      %1960 = vmatpush.msra.mxu0 0.0
      %1961 = vmatpush.msra.mxu0 0.0
      %1962 = vmatpush.msra.mxu0 0.0
      %1963 = vmatpush.msra.mxu0 %v1280
      %1964 = vmatmul.f32.gmra.mxu0 %v1946
      %v1965 = vpop.f32.mrf.mxu0
      %v1966 = vadd.f32 0.0, %v1965
      %1967 = vdwg.mxu0
      %v1968 = vsel %vm438, %v1897, 0.0
      %v1969 = vsel %vm438, %v1920, 0.0
      %v1970 = vadd.f32 %v1968, %v1969
      %v1971 = vsel %vm438, %v1943, 0.0
      %v1972 = vadd.f32 %v1970, %v1971
      %v1973 = vsel %vm438, %v1966, 0.0
      %v1974 = vadd.f32 %v1972, %v1973
      %v1975 = vperm.slane %v1282, 0
      %v1976 = vadd.f32 %v1974, %v1975
      %v1977 = vadd.f32 %v1275, %v1976
      %v1978 = vsel %vm438, %v1977, 0.0
      %1979 = vadd.xlane.f32.xlu0 %v1978
      %v1980 = vpop.xlane.xlu0 %1979
      %v1981 = vmul.f32 %v1980, %v1110
      %v1982 = vsub.f32 %v1977, %v1981
      %v1983 = vmul.f32 %v1982, %v1982
      %v1984 = vsel %vm438, %v1983, 0.0
      %1985 = vadd.xlane.f32.xlu0 %v1984
      %v1986 = vpop.xlane.xlu0 %1985
      %v1987 = vmul.f32 %v1986, %v1110
      %v1988 = vadd.f32 %v1987, 1e-12
      %v1989 = vrsqrt.pop %v1988
      %v1990 = vmul.f32 %v1989, %v1988
      %v1991 = vmul.f32 %v1990, %v1989
      %v1992 = vmul.f32 0.5, %v1991
      %v1993 = vsub.f32 1.5, %v1992
      %v1994 = vmul.f32 %v1989, %v1993
      %vm1995 = vweird.f32 %v1988
      %vm1996 = vweird.f32 %v1989
      %vm1997 = vmor %vm1995, %vm1996
      %v1998 = vsel %vm1997, %v1989, %v1994
      %v1999 = vmul.f32 %v1982, %v1998
      %v2000 = vperm.slane %v1282, 1
      %v2001 = vmul.f32 %v1999, %v2000
      %v2002 = vperm.slane %v1282, 2
      %v2003 = vadd.f32 %v2001, %v2002
      %s2004 = scalar_lea.vmem %s5, 32
      %v2005 = vld [vmem:[%s2004] sm:$0xff]
      %v2006 = vld [vmem:[%s2004 + $0x8] sm:$0xff]
      %v2007 = vld [vmem:[%s2004 + $0x10] sm:$0xff]
      %v2008 = vld [vmem:[%s2004 + $0x18] sm:$0xff]
      %s2009 = scalar_lea.vmem %s6, 1
      %v2010 = vld [vmem:[%s2009] sm:$0x1]
      %v2012 = vperm.slane %v2010, 0
      %v2015 = vsel %vm438, %v2003, 0
      %2017 = vmatpush.msra.mxu0 0.0
      %2018 = vmatpush.msra.mxu0 0.0
      %2019 = vmatpush.msra.mxu0 0.0
      %2020 = vmatpush.msra.mxu0 0.0
      %2021 = vmatpush.msra.mxu0 0.0
      %2022 = vmatpush.msra.mxu0 0.0
      %2023 = vmatpush.msra.mxu0 0.0
      %2024 = vmatpush.msra.mxu0 0.0
      %2025 = vmatpush.msra.mxu0 0.0
      %2026 = vmatpush.msra.mxu0 0.0
      %2027 = vmatpush.msra.mxu0 0.0
      %2028 = vmatpush.msra.mxu0 0.0
      %2029 = vmatpush.msra.mxu0 %v2008
      %2030 = vmatpush.msra.mxu0 %v2007
      %2031 = vmatpush.msra.mxu0 %v2006
      %2032 = vmatpush.msra.mxu0 %v2005
      %2033 = vmatmul.f32.gmra.mxu0 %v2015
      %v2034 = vpop.f32.mrf.mxu0
      %v2035 = vadd.f32 %v2012, %v2034
      %2036 = vdwg.mxu0
      %v2037 = vmul.f32 %v2035, 0.5
      %v2038 = vmul.f32 %v2035, %v1172
      %v2039 = vmul.f32 %v2038, %v2038
      %v2040 = vmin.f32 16.0, %v2039
      %v2041 = vmul.f32 %v2040, 2.1237322e-06
      %v2042 = vadd.f32 %v2041, 0.00028619796
      %v2043 = vmul.f32 %v2040, %v2042
      %v2044 = vadd.f32 %v2043, 0.0036580483
      %v2045 = vmul.f32 %v2040, %v2044
      %v2046 = vadd.f32 %v2045, 0.05243302
      %v2047 = vmul.f32 %v2040, %v2046
      %v2048 = vadd.f32 %v2047, 0.18741608
      %v2049 = vmul.f32 %v2040, %v2048
      %v2050 = vadd.f32 %v2049, 1.1283791
      %v2051 = vmul.f32 %v2038, %v2050
      %v2052 = vmul.f32 %v2040, 3.8918573e-05
      %v2053 = vadd.f32 %v2052, 0.001143296
      %v2054 = vmul.f32 %v2040, %v2053
      %v2055 = vadd.f32 %v2054, 0.014752088
      %v2056 = vmul.f32 %v2040, %v2055
      %v2057 = vadd.f32 %v2056, 0.112945676
      %v2058 = vmul.f32 %v2040, %v2057
      %v2059 = vadd.f32 %v2058, 0.4994258
      %v2060 = vmul.f32 %v2040, %v2059
      %v2061 = vadd.f32 %v2060, 1.0
      %v2062 = vrcp.pop %v2061
      %v2063 = vmul.f32 %v2061, %v2062
      %v2064 = vsub.f32 1.0, %v2063
      %v2065 = vmul.f32 %v2062, %v2064
      %v2066 = vadd.f32 %v2062, %v2065
      %vm2067 = vweird.f32 %v2061
      %vm2068 = vweird.f32 %v2062
      %vm2069 = vmor %vm2067, %vm2068
      %v2070 = vsel %vm2069, %v2062, %v2066
      %v2071 = vand.u32 2147483647, %v2061
      %vm2072 = vcmp.eq.f32.partialorder %v2071, 8.507059e+37
      %v2073 = vand.u32 %v2061, 2147483648
      %v2074 = vor.u32 1.1754944e-38, %v2073
      %v2075 = vsel %vm2072, %v2074, %v2070
      %v2076 = vmul.f32 %v2051, %v2075
      %v2077 = vmin.f32 %v2076, 1.0
      %v2078 = vmax.f32 %v2077, -1.0
      %v2079 = vadd.f32 %v2078, 1.0
      %v2080 = vmul.f32 %v2037, %v2079
      %s2081 = scalar_lea.vmem %s7, 64
      %v2082 = vld [vmem:[%s2081] sm:$0xff]
      %v2083 = vld [vmem:[%s2081 + $0x8] sm:$0xff]
      %v2084 = vld [vmem:[%s2081 + $0x10] sm:$0xff]
      %v2085 = vld [vmem:[%s2081 + $0x18] sm:$0xff]
      %v2086 = vld [vmem:[%s2081 + $0x20] sm:$0xff]
      %v2087 = vld [vmem:[%s2081 + $0x28] sm:$0xff]
      %v2088 = vld [vmem:[%s2081 + $0x30] sm:$0xff]
      %v2089 = vld [vmem:[%s2081 + $0x38] sm:$0xff]
      %v2090 = vperm.slane %v1282, 3
      %v2092 = vsel %vm1225, %v2080, 0
      %2094 = vmatpush.msra.mxu0 0.0
      %2095 = vmatpush.msra.mxu0 0.0
      %2096 = vmatpush.msra.mxu0 0.0
      %2097 = vmatpush.msra.mxu0 0.0
      %2098 = vmatpush.msra.mxu0 0.0
      %2099 = vmatpush.msra.mxu0 0.0
      %2100 = vmatpush.msra.mxu0 0.0
      %2101 = vmatpush.msra.mxu0 0.0
      %2102 = vmatpush.msra.mxu0 %v2089
      %2103 = vmatpush.msra.mxu0 %v2088
      %2104 = vmatpush.msra.mxu0 %v2087
      %2105 = vmatpush.msra.mxu0 %v2086
      %2106 = vmatpush.msra.mxu0 %v2085
      %2107 = vmatpush.msra.mxu0 %v2084
      %2108 = vmatpush.msra.mxu0 %v2083
      %2109 = vmatpush.msra.mxu0 %v2082
      %2110 = vmatmul.f32.gmra.mxu0 %v2092
      %v2111 = vpop.f32.mrf.mxu0
      %v2112 = vadd.f32 %v2090, %v2111
      %2113 = vdwg.mxu0
      %v2114 = vadd.f32 %v2003, %v2112
      %v2115 = vsel %vm438, %v2114, 0.0
      %2116 = vadd.xlane.f32.xlu0 %v2115
      %v2117 = vpop.xlane.xlu0 %2116
      %v2118 = vmul.f32 %v2117, %v1110
      %v2119 = vsub.f32 %v2114, %v2118
      %v2120 = vmul.f32 %v2119, %v2119
      %v2121 = vsel %vm438, %v2120, 0.0
      %2122 = vadd.xlane.f32.xlu0 %v2121
      %v2123 = vpop.xlane.xlu0 %2122
      %v2124 = vmul.f32 %v2123, %v1110
      %v2125 = vadd.f32 %v2124, 1e-12
      %v2126 = vrsqrt.pop %v2125
      %v2127 = vmul.f32 %v2126, %v2125
      %v2128 = vmul.f32 %v2127, %v2126
      %v2129 = vmul.f32 0.5, %v2128
      %v2130 = vsub.f32 1.5, %v2129
      %v2131 = vmul.f32 %v2126, %v2130
      %vm2132 = vweird.f32 %v2125
      %vm2133 = vweird.f32 %v2126
      %vm2134 = vmor %vm2132, %vm2133
      %v2135 = vsel %vm2134, %v2126, %v2131
      %v2136 = vmul.f32 %v2119, %v2135
      %v2137 = vperm.slane %v1282, 4
      %v2138 = vmul.f32 %v2136, %v2137
      %v2139 = vperm.slane %v1282, 5
      %v2140 = vadd.f32 %v2138, %v2139
      %v2141 = vld [vmem:[%s9] sm:$0xff]
      %v2142 = vld [vmem:[%s9 + $0x8] sm:$0xff]
      %v2143 = vld [vmem:[%s9 + $0x10] sm:$0xff]
      %v2144 = vld [vmem:[%s9 + $0x18] sm:$0xff]
      %v2145 = vld [vmem:[%s10] sm:$0x1]
      %v2147 = vperm.slane %v2145, 0
      %v2150 = vsel %vm438, %v2140, 0
      %2152 = vmatpush.msra.mxu0 0.0
      %2153 = vmatpush.msra.mxu0 0.0
      %2154 = vmatpush.msra.mxu0 0.0
      %2155 = vmatpush.msra.mxu0 0.0
      %2156 = vmatpush.msra.mxu0 0.0
      %2157 = vmatpush.msra.mxu0 0.0
      %2158 = vmatpush.msra.mxu0 0.0
      %2159 = vmatpush.msra.mxu0 0.0
      %2160 = vmatpush.msra.mxu0 0.0
      %2161 = vmatpush.msra.mxu0 0.0
      %2162 = vmatpush.msra.mxu0 0.0
      %2163 = vmatpush.msra.mxu0 0.0
      %2164 = vmatpush.msra.mxu0 %v2144
      %2165 = vmatpush.msra.mxu0 %v2143
      %2166 = vmatpush.msra.mxu0 %v2142
      %2167 = vmatpush.msra.mxu0 %v2141
      %2168 = vmatmul.f32.gmra.mxu0 %v2150
      %v2169 = vpop.f32.mrf.mxu0
      %v2170 = vadd.f32 %v2147, %v2169
      %2171 = vdwg.mxu0
      %vm2172 = vcmask 15360
      %2173 = vst.msk [vmem:[%s395] sm:$0xff] %vm2172, %v2170
      %p2174 = scmp.lt.s32.totalorder %s22, 1
      %s2175 = scalar_select %p2174, %s22, 1
      %s2176 = smul.addr %s2175, 8
      %s2177 = scalar_lea.vmem %s11, %s2176
      // Predicated region
      $region65: #{tpu_custom_call.1} parent=63 // pred_check
        %p2178 = pneg %p281
      $region66: #{tpu_custom_call.1} parent=63 // pred_check_branch
        %2180 = sbr.rel (%p2178) target = $region68
      $region67: #{tpu_custom_call.1} parent=63 // pred_region
        _
      $region68: #{tpu_custom_call.1} parent=63 // pred_fallthru
        _
    $region64: #{tpu_custom_call.1} parent=5 // pred_fallthru
      _
    %p2181 = scmp.le.s32.totalorder 2, %s17
    // Predicated region
    $region69: #{tpu_custom_call.1} parent=5 // pred_check
      %p2182 = pneg %p2181
    $region70: #{tpu_custom_call.1} parent=5 // pred_check_branch
      %2184 = sbr.rel (%p2182) target = $region72
    $region71: #{tpu_custom_call.1} parent=5 // pred_region
      %s2185 = ssub.s32 %s17, 2
      // Predicated region
      $region73: #{tpu_custom_call.1} parent=71 // pred_check
        %p2186 = pneg %p287
      $region74: #{tpu_custom_call.1} parent=71 // pred_check_branch
        %2188 = sbr.rel (%p2186) target = $region76
      $region75: #{tpu_custom_call.1} parent=71 // pred_region
        %p2189 = scmp.lt.s32.totalorder %s23, 1
        %s2190 = scalar_select %p2189, %s23, 1
        %s2191 = smul.addr %s2190, 8
        %s2192 = scalar_lea.vmem %s11, %s2191
      $region76: #{tpu_custom_call.1} parent=71 // pred_fallthru
        _
    $region72: #{tpu_custom_call.1} parent=5 // pred_fallthru
      _
  $region6: #{tpu_custom_call.1} parent=0 // loop_footer
    %s21 = sadd.s32 1, %s17
  $region7: #{tpu_custom_call.1} parent=0 // loop_footer_branch
    %16 = sbr.rel target = $region3
  $region8: #{tpu_custom_call.1} parent=0 // loop_exit
    _

</llo_original>
